<compile_context>
chip_gen: v7x
topology: tpu7x:2x2x1
jax: 0.10.0
libtpu: 0.0.40
codegen_flags: <defaults>
</compile_context>

<pallas_src>
import jax
import jax.numpy as jnp
from jax.experimental import pallas as pl
from jax.experimental.pallas import tpu as pltpu

# ----------------------------- model hyperparams -----------------------------
HALF_DIM = 64          # cvt.half_dim (synthetic choice, small)
MLP_HIDDEN = 400       # mlp_hidden_size default
MLP_LAYERS = 3         # mlp_layers default
BATCH = 16             # small demo batch; kernel tiles it over a grid
BATCH_TILE = 8


# --------------------------------- kernel ------------------------------------
def mlp_kernel(x_ref,
               w0_ref, b0_ref,
               w1_ref, b1_ref,
               w2_ref, b2_ref,
               wr_ref, br_ref,
               o_ref):
    """One batch-tile of the MLP forward. Weights are VMEM-resident across
    grid steps (their BlockSpecs always map to block (0, 0)).

    x_ref : (TB, HALF_DIM)           f32
    w*_ref: (in, out) bf16 weights,  b*_ref: (1, out) f32
    wr_ref: (1, MLP_HIDDEN) f32 regressor row, br_ref: (1, 1) f32
    o_ref : (TB, 1)                  f32
    """
    # layer 0: Linear + ReLU (bf16 MXU inputs, f32 accumulate)
    h = jnp.dot(x_ref[...].astype(jnp.bfloat16), w0_ref[...],
                preferred_element_type=jnp.float32) + b0_ref[...]
    h = jnp.maximum(h, 0.0)

    # layer 1: Linear + ReLU
    h = jnp.dot(h.astype(jnp.bfloat16), w1_ref[...],
                preferred_element_type=jnp.float32) + b1_ref[...]
    h = jnp.maximum(h, 0.0)

    # layer 2: Linear + ReLU
    h = jnp.dot(h.astype(jnp.bfloat16), w2_ref[...],
                preferred_element_type=jnp.float32) + b2_ref[...]
    h = jnp.maximum(h, 0.0)

    # regressor: Linear(H, 1) as VPU mul + lane reduction (avoid N=1 MXU pass)
    out = jnp.sum(h * wr_ref[...], axis=-1, keepdims=True) + br_ref[...]
    o_ref[...] = out.astype(o_ref.dtype)


# ----------------------- one-time parameter preparation -----------------------
def prepare_params(params):
    """Convert PyTorch-convention params (out,in)/(out,) into the kernel layout
    ONCE, off the hot path: (in,out) bf16 hidden weights, (1,out) f32 biases,
    regressor kept as a f32 (1, H) row for the VPU reduction."""
    return {
        "w0": jnp.asarray(params["w0"].T, jnp.bfloat16),   # (HALF_DIM, H)
        "w1": jnp.asarray(params["w1"].T, jnp.bfloat16),   # (H, H)
        "w2": jnp.asarray(params["w2"].T, jnp.bfloat16),   # (H, H)
        "wr": jnp.asarray(params["wr"], jnp.float32),      # (1, H) -- already a row
        "b0": params["b0"].reshape(1, -1).astype(jnp.float32),
        "b1": params["b1"].reshape(1, -1).astype(jnp.float32),
        "b2": params["b2"].reshape(1, -1).astype(jnp.float32),
        "br": params["br"].reshape(1, -1).astype(jnp.float32),  # (1, 1)
    }


# --------------------------------- wrapper -----------------------------------
def mlp_forward(x, prep, *, batch_tile=BATCH_TILE):
    """x: (B, HALF_DIM) f32; prep: output of prepare_params."""
    B = x.shape[0]
    Bp = ((B + batch_tile - 1) // batch_tile) * batch_tile
    if Bp != B:
        x = jnp.pad(x, ((0, Bp - B), (0, 0)))

    H = MLP_HIDDEN
    # Weights/biases: full-array blocks, same block index for every grid step
    # -> DMA'd once, resident in VMEM across all batch tiles.
    w_spec = lambda shape: pl.BlockSpec(shape, lambda i: (0, 0))

    out = pl.pallas_call(
        mlp_kernel,
        out_shape=jax.ShapeDtypeStruct((Bp, 1), jnp.float32),
        grid=(Bp // batch_tile,),
        in_specs=[
            pl.BlockSpec((batch_tile, HALF_DIM), lambda i: (i, 0)),  # x
            w_spec((HALF_DIM, H)),  # w0
            w_spec((1, H)),         # b0
            w_spec((H, H)),         # w1
            w_spec((1, H)),         # b1
            w_spec((H, H)),         # w2
            w_spec((1, H)),         # b2
            w_spec((1, H)),         # wr (regressor row)
            w_spec((1, 1)),         # br
        ],
        out_specs=pl.BlockSpec((batch_tile, 1), lambda i: (i, 0)),
        compiler_params=pltpu.CompilerParams(
            dimension_semantics=("parallel",)),
    )(x, prep["w0"], prep["b0"], prep["w1"], prep["b1"],
      prep["w2"], prep["b2"], prep["wr"], prep["br"])
    return out[:B]


# ------------------------- deterministic parameter init ----------------------
def init_params(key):
    ks = jax.random.split(key, 8)

    def lin(kw, kb, fan_in, fan_out):
        # PyTorch nn.Linear default: U(-1/sqrt(fan_in), 1/sqrt(fan_in))
        bound = 1.0 / jnp.sqrt(fan_in)
        w = jax.random.uniform(kw, (fan_out, fan_in), jnp.float32, -bound, bound)
        b = jax.random.uniform(kb, (fan_out,), jnp.float32, -bound, bound)
        return w, b

    w0, b0 = lin(ks[0], ks[1], HALF_DIM, MLP_HIDDEN)
    w1, b1 = lin(ks[2], ks[3], MLP_HIDDEN, MLP_HIDDEN)
    w2, b2 = lin(ks[4], ks[5], MLP_HIDDEN, MLP_HIDDEN)
    wr, br = lin(ks[6], ks[7], MLP_HIDDEN, 1)
    return {"w0": w0, "b0": b0, "w1": w1, "b1": b1,
            "w2": w2, "b2": b2, "wr": wr, "br": br}


# --------------------------------- references ---------------------------------
def mlp_reference_matched(x, prep):
    """Same mixed precision as the kernel (bf16 MXU inputs, f32 accumulate)."""
    h = jnp.dot(x.astype(jnp.bfloat16), prep["w0"],
                preferred_element_type=jnp.float32) + prep["b0"]
    h = jnp.maximum(h, 0.0)
    h = jnp.dot(h.astype(jnp.bfloat16), prep["w1"],
                preferred_element_type=jnp.float32) + prep["b1"]
    h = jnp.maximum(h, 0.0)
    h = jnp.dot(h.astype(jnp.bfloat16), prep["w2"],
                preferred_element_type=jnp.float32) + prep["b2"]
    h = jnp.maximum(h, 0.0)
    return jnp.sum(h * prep["wr"], axis=-1, keepdims=True) + prep["br"]


def mlp_reference_f32(x, p):
    """Full-precision PyTorch-equivalent reference."""
    h = jnp.maximum(x @ p["w0"].T + p["b0"], 0.0)
    h = jnp.maximum(h @ p["w1"].T + p["b1"], 0.0)
    h = jnp.maximum(h @ p["w2"].T + p["b2"], 0.0)
    return h @ p["wr"].T + p["br"]


# ----------------------------------- main -------------------------------------
if __name__ == "__main__":
    key = jax.random.PRNGKey(0)
    k_x, k_p = jax.random.split(key)

    x = jax.random.normal(k_x, (BATCH, HALF_DIM), jnp.float32)
    params = init_params(k_p)
    prep = prepare_params(params)   # one-time weight transpose + bf16 cast

    out = mlp_forward(x, prep)
    out = jax.block_until_ready(out)
    assert out.shape == (BATCH, 1), out.shape

    # Precision-matched reference (bf16 weights/inputs, f32 accumulate): tight.
    ref_matched = mlp_reference_matched(x, prep)
    assert jnp.allclose(out, ref_matched, atol=2e-3, rtol=2e-3), (out, ref_matched)

    # Full-f32 reference: loose tolerance accounts for bf16 weight rounding.
    ref_f32 = mlp_reference_f32(x, params)
    assert jnp.allclose(out, ref_f32, atol=0.15, rtol=0.1), (out, ref_f32)

    # TODO(synk): quantize=True branch (split input + quantize_fc add) and
    # pretrained state_dict loading are not exercised; same kernel structure
    # applies with an extra bf16 matmul on x[:, half_dim:].

    print("KERNEL_OK")
</pallas_src>

<mosaic_0001>
module attributes {stable_mosaic.version = 11 : i64} {
  func.func @mlp_kernel(%arg0: i32, %arg1: memref<8x64xf32, #tpu.memory_space<vmem>>, %arg2: memref<64x400xbf16, #tpu.memory_space<vmem>>, %arg3: memref<1x400xf32, #tpu.memory_space<vmem>>, %arg4: memref<400x400xbf16, #tpu.memory_space<vmem>>, %arg5: memref<1x400xf32, #tpu.memory_space<vmem>>, %arg6: memref<400x400xbf16, #tpu.memory_space<vmem>>, %arg7: memref<1x400xf32, #tpu.memory_space<vmem>>, %arg8: memref<1x400xf32, #tpu.memory_space<vmem>>, %arg9: memref<1x1xf32, #tpu.memory_space<vmem>>, %arg10: memref<8x1xf32, #tpu.memory_space<vmem>>) attributes {dimension_semantics = [#tpu.dimension_semantics<parallel>], iteration_bounds = array<i64: 2>, scalar_prefetch = 0 : i64, scratch_operands = 0 : i64, tpu.core_type = #tpu.core_type<tc>, window_params = [{transform_indices = @transform_0, window_bounds = array<i64: 8, 64>}, {pipeline_mode = #tpu.pipeline_mode<synchronous>, transform_indices = @transform_1, window_bounds = array<i64: 64, 400>}, {pipeline_mode = #tpu.pipeline_mode<synchronous>, transform_indices = @transform_2, window_bounds = array<i64: 1, 400>}, {pipeline_mode = #tpu.pipeline_mode<synchronous>, transform_indices = @transform_3, window_bounds = array<i64: 400, 400>}, {pipeline_mode = #tpu.pipeline_mode<synchronous>, transform_indices = @transform_4, window_bounds = array<i64: 1, 400>}, {pipeline_mode = #tpu.pipeline_mode<synchronous>, transform_indices = @transform_5, window_bounds = array<i64: 400, 400>}, {pipeline_mode = #tpu.pipeline_mode<synchronous>, transform_indices = @transform_6, window_bounds = array<i64: 1, 400>}, {pipeline_mode = #tpu.pipeline_mode<synchronous>, transform_indices = @transform_7, window_bounds = array<i64: 1, 400>}, {pipeline_mode = #tpu.pipeline_mode<synchronous>, transform_indices = @transform_8, window_bounds = array<i64: 1, 1>}, {transform_indices = @transform_9, window_bounds = array<i64: 8, 1>}]} {
    %c0 = arith.constant 0 : index
    %c0_0 = arith.constant 0 : index
    %0 = vector.load %arg1[%c0, %c0_0] : memref<8x64xf32, #tpu.memory_space<vmem>>, vector<8x64xf32>
    %1 = arith.truncf %0 : vector<8x64xf32> to vector<8x64xbf16>
    %c0_1 = arith.constant 0 : index
    %c0_2 = arith.constant 0 : index
    %2 = vector.load %arg2[%c0_1, %c0_2] : memref<64x400xbf16, #tpu.memory_space<vmem>>, vector<64x400xbf16>
    %cst = arith.constant dense<0.000000e+00> : vector<8x400xf32>
    %3 = tpu.matmul %1, %2, %cst {dimension_numbers = #tpu.dot_dimension_numbers<[1], [0], [0], [1], [0, 0, 1, 1], [], []>} : vector<8x64xbf16>, vector<64x400xbf16>, vector<8x400xf32> -> vector<8x400xf32>
    %c0_3 = arith.constant 0 : index
    %c0_4 = arith.constant 0 : index
    %4 = vector.load %arg3[%c0_3, %c0_4] : memref<1x400xf32, #tpu.memory_space<vmem>>, vector<1x400xf32>
    %5 = vector.broadcast %4 : vector<1x400xf32> to vector<8x400xf32>
    %6 = arith.addf %3, %5 : vector<8x400xf32>
    %cst_5 = arith.constant 0.000000e+00 : f32
    %7 = vector.broadcast %cst_5 : f32 to vector<8x400xf32>
    %8 = arith.maximumf %6, %7 : vector<8x400xf32>
    %9 = arith.truncf %8 : vector<8x400xf32> to vector<8x400xbf16>
    %c0_6 = arith.constant 0 : index
    %c0_7 = arith.constant 0 : index
    %10 = vector.load %arg4[%c0_6, %c0_7] : memref<400x400xbf16, #tpu.memory_space<vmem>>, vector<400x400xbf16>
    %cst_8 = arith.constant dense<0.000000e+00> : vector<8x400xf32>
    %11 = tpu.matmul %9, %10, %cst_8 {dimension_numbers = #tpu.dot_dimension_numbers<[1], [0], [0], [1], [0, 0, 1, 1], [], []>} : vector<8x400xbf16>, vector<400x400xbf16>, vector<8x400xf32> -> vector<8x400xf32>
    %c0_9 = arith.constant 0 : index
    %c0_10 = arith.constant 0 : index
    %12 = vector.load %arg5[%c0_9, %c0_10] : memref<1x400xf32, #tpu.memory_space<vmem>>, vector<1x400xf32>
    %13 = vector.broadcast %12 : vector<1x400xf32> to vector<8x400xf32>
    %14 = arith.addf %11, %13 : vector<8x400xf32>
    %cst_11 = arith.constant 0.000000e+00 : f32
    %15 = vector.broadcast %cst_11 : f32 to vector<8x400xf32>
    %16 = arith.maximumf %14, %15 : vector<8x400xf32>
    %17 = arith.truncf %16 : vector<8x400xf32> to vector<8x400xbf16>
    %c0_12 = arith.constant 0 : index
    %c0_13 = arith.constant 0 : index
    %18 = vector.load %arg6[%c0_12, %c0_13] : memref<400x400xbf16, #tpu.memory_space<vmem>>, vector<400x400xbf16>
    %cst_14 = arith.constant dense<0.000000e+00> : vector<8x400xf32>
    %19 = tpu.matmul %17, %18, %cst_14 {dimension_numbers = #tpu.dot_dimension_numbers<[1], [0], [0], [1], [0, 0, 1, 1], [], []>} : vector<8x400xbf16>, vector<400x400xbf16>, vector<8x400xf32> -> vector<8x400xf32>
    %c0_15 = arith.constant 0 : index
    %c0_16 = arith.constant 0 : index
    %20 = vector.load %arg7[%c0_15, %c0_16] : memref<1x400xf32, #tpu.memory_space<vmem>>, vector<1x400xf32>
    %21 = vector.broadcast %20 : vector<1x400xf32> to vector<8x400xf32>
    %22 = arith.addf %19, %21 : vector<8x400xf32>
    %cst_17 = arith.constant 0.000000e+00 : f32
    %23 = vector.broadcast %cst_17 : f32 to vector<8x400xf32>
    %24 = arith.maximumf %22, %23 : vector<8x400xf32>
    %c0_18 = arith.constant 0 : index
    %c0_19 = arith.constant 0 : index
    %25 = vector.load %arg8[%c0_18, %c0_19] : memref<1x400xf32, #tpu.memory_space<vmem>>, vector<1x400xf32>
    %26 = vector.broadcast %25 : vector<1x400xf32> to vector<8x400xf32>
    %27 = arith.mulf %24, %26 : vector<8x400xf32>
    %cst_20 = arith.constant dense<0.000000e+00> : vector<8xf32>
    %28 = vector.multi_reduction <add>, %27, %cst_20 [1] : vector<8x400xf32> to vector<8xf32>
    %29 = vector.shape_cast %28 : vector<8xf32> to vector<8x1xf32>
    %c0_21 = arith.constant 0 : index
    %c0_22 = arith.constant 0 : index
    %30 = vector.load %arg9[%c0_21, %c0_22] : memref<1x1xf32, #tpu.memory_space<vmem>>, vector<1x1xf32>
    %31 = vector.broadcast %30 : vector<1x1xf32> to vector<8x1xf32>
    %32 = arith.addf %29, %31 : vector<8x1xf32>
    %c0_23 = arith.constant 0 : index
    %c0_24 = arith.constant 0 : index
    %33 = vector.load %arg10[%c0_23, %c0_24] : memref<8x1xf32, #tpu.memory_space<vmem>>, vector<8x1xf32>
    tpu.vector_store %arg10[%c0_23, %c0_24], %32 {strides = array<i32>} : memref<8x1xf32, #tpu.memory_space<vmem>>, vector<8x1xf32>,
    return
  }
  func.func @transform_0(%arg0: i32) -> (i32, i32) {
    %c0_i32 = arith.constant 0 : i32
    %c0_i32_0 = arith.constant 0 : i32
    return %arg0, %c0_i32 : i32, i32
  }
  func.func @transform_1(%arg0: i32) -> (i32, i32) {
    %c0_i32 = arith.constant 0 : i32
    %c0_i32_0 = arith.constant 0 : i32
    %c0_i32_1 = arith.constant 0 : i32
    return %c0_i32, %c0_i32_0 : i32, i32
  }
  func.func @transform_2(%arg0: i32) -> (i32, i32) {
    %c0_i32 = arith.constant 0 : i32
    %c0_i32_0 = arith.constant 0 : i32
    %c0_i32_1 = arith.constant 0 : i32
    return %c0_i32, %c0_i32_0 : i32, i32
  }
  func.func @transform_3(%arg0: i32) -> (i32, i32) {
    %c0_i32 = arith.constant 0 : i32
    %c0_i32_0 = arith.constant 0 : i32
    %c0_i32_1 = arith.constant 0 : i32
    return %c0_i32, %c0_i32_0 : i32, i32
  }
  func.func @transform_4(%arg0: i32) -> (i32, i32) {
    %c0_i32 = arith.constant 0 : i32
    %c0_i32_0 = arith.constant 0 : i32
    %c0_i32_1 = arith.constant 0 : i32
    return %c0_i32, %c0_i32_0 : i32, i32
  }
  func.func @transform_5(%arg0: i32) -> (i32, i32) {
    %c0_i32 = arith.constant 0 : i32
    %c0_i32_0 = arith.constant 0 : i32
    %c0_i32_1 = arith.constant 0 : i32
    return %c0_i32, %c0_i32_0 : i32, i32
  }
  func.func @transform_6(%arg0: i32) -> (i32, i32) {
    %c0_i32 = arith.constant 0 : i32
    %c0_i32_0 = arith.constant 0 : i32
    %c0_i32_1 = arith.constant 0 : i32
    return %c0_i32, %c0_i32_0 : i32, i32
  }
  func.func @transform_7(%arg0: i32) -> (i32, i32) {
    %c0_i32 = arith.constant 0 : i32
    %c0_i32_0 = arith.constant 0 : i32
    %c0_i32_1 = arith.constant 0 : i32
    return %c0_i32, %c0_i32_0 : i32, i32
  }
  func.func @transform_8(%arg0: i32) -> (i32, i32) {
    %c0_i32 = arith.constant 0 : i32
    %c0_i32_0 = arith.constant 0 : i32
    %c0_i32_1 = arith.constant 0 : i32
    return %c0_i32, %c0_i32_0 : i32, i32
  }
  func.func @transform_9(%arg0: i32) -> (i32, i32) {
    %c0_i32 = arith.constant 0 : i32
    %c0_i32_0 = arith.constant 0 : i32
    return %arg0, %c0_i32 : i32, i32
  }
}

</mosaic_0001>

<llo_original>
// kernel: tpu_custom_call.1
$region0: #{tpu_custom_call.1}
  #allocation0 [shape = 'u32[]', space=smem, size = 0x4, offset = 0x4, fixed_abs, tag = 'smem constant byte address 0x4 - core index']
  #allocation1 [shape = 'u32[144,128]{1,0:T(1,128)}', space=vmem, size = 0x12000, scoped, tag = 'internal scratch']
  #allocation2 [shape = 'f32[1,1]{1,0:T(1,128)S(1)}', space=vmem, size = 0x200, scoped, tag = 'scoped memory for tpu_custom_call.1']
  %s0 = inlined_call_operand.hbm [shape: f32[16,64], index: 0, kind: input, shape index: {}]
  %s1 = inlined_call_operand.hbm [shape: bf16[64,400], index: 1, kind: input, shape index: {}]
  %s2 = inlined_call_operand.vmem [shape: f32[1,400], index: 2, kind: input, shape index: {}]
  %s3 = inlined_call_operand.hbm [shape: bf16[400,400], index: 3, kind: input, shape index: {}]
  %s4 = inlined_call_operand.vmem [shape: f32[1,400], index: 4, kind: input, shape index: {}]
  %s5 = inlined_call_operand.hbm [shape: bf16[400,400], index: 5, kind: input, shape index: {}]
  %s6 = inlined_call_operand.vmem [shape: f32[1,400], index: 6, kind: input, shape index: {}]
  %s7 = inlined_call_operand.vmem [shape: f32[1,400], index: 7, kind: input, shape index: {}]
  %s8 = inlined_call_operand.<no memory space> [shape: f32[1,1], index: 8, kind: input, shape index: {}]
  %s9 = inlined_call_operand.vmem [shape: f32[16,1], index: 9, kind: output, shape index: {}]
  %s10 = sld [smem:[#allocation0]]
  $region85: #{tpu_custom_call.1} parent=0
    _
  %s12 = ssub.s32 1, %s10
  %s13 = scalar_select 0, %s12, %s10
  %v14 = vstv %s8
  %15 = vst [vmem:[#allocation2] sm:$0x1] %v14
  $region1: #{tpu_custom_call.1} parent=0
    #allocation3 [shape = 'u8[8192]{0}', space=vmem, size = 0x2000, scoped, tag = 'input window, operand 0']
    #allocation4 [shape = 's32[2]{0}', space=sflag, size = 0x8, scoped, tag = 'scoped memory for tpu_custom_call.1']
    #allocation5 [shape = 'u8[65536]{0}', space=vmem, size = 0x10000, scoped, tag = 'input window, operand 1, single buffered']
    #allocation6 [shape = 's32[1]{0}', space=sflag, size = 0x4, scoped, tag = 'scoped memory for tpu_custom_call.1']
    #allocation7 [shape = 'u8[409600]{0}', space=vmem, size = 0x64000, scoped, tag = 'input window, operand 3, single buffered']
    #allocation8 [shape = 'u8[409600]{0}', space=vmem, size = 0x64000, scoped, tag = 'input window, operand 5, single buffered']
    #allocation9 [shape = 's32[1]{0}', space=sflag, size = 0x4, scoped, tag = 'scoped memory for tpu_custom_call.1']
    %16 = vsyncpa [#allocation4], 0
    %s17 = scalar_lea.sflag [#allocation4], 1
    %18 = vsyncpa %s17, 0
    %19 = vsyncpa [#allocation6], 0
    %20 = vsyncpa [#allocation9], 0
    loop: start=0, step=1, limit=4
    $region2: #{tpu_custom_call.1} parent=1 // loop_pre_header
      _
    $region3: #{tpu_custom_call.1} parent=1 // loop_header
      %s22 = sphi 0, %s26
      %p23 = scmp.ge.s32.totalorder %s22, 4
      %s32 = sphi 0, %s34
      %s35 = sphi 0, %s32
      %s36 = sphi 0, %s35
      %s52 = sphi 0, %s36
      %s56 = sphi 0, %s56
      %s58 = sphi 0, %s56
      %s59 = sphi 0, %s58
      %s73 = sphi 0, %s59
      %s77 = sphi 0, %s77
      %s79 = sphi 0, %s77
      %s80 = sphi 0, %s79
      %s94 = sphi 0, %s80
      %s98 = sphi 0, %s98
      %s100 = sphi 0, %s98
      %s101 = sphi 0, %s100
      %s115 = sphi 0, %s101
      %s119 = sphi 0, %s119
      %s121 = sphi 0, %s119
      %s122 = sphi 0, %s121
      %s136 = sphi 0, %s122
      %s140 = sphi 0, %s140
      %s142 = sphi 0, %s140
      %s143 = sphi 0, %s142
      %s157 = sphi 0, %s143
      %s161 = sphi 0, %s161
      %s163 = sphi 0, %s161
      %s164 = sphi 0, %s163
      %s178 = sphi 0, %s164
      %s182 = sphi 0, %s182
      %s184 = sphi 0, %s182
      %s185 = sphi 0, %s184
      %s199 = sphi 0, %s185
      %s203 = sphi 0, %s203
      %s205 = sphi 0, %s203
      %s206 = sphi 0, %s205
      %s220 = sphi 0, %s206
      %s226 = sphi 0, %s228
      %s229 = sphi 0, %s226
      %s230 = sphi 0, %s229
      %s246 = sphi 0, %s230
    $region4: #{tpu_custom_call.1} parent=1 // loop_header_branch
      %25 = sbr.rel (%p23) target = $region8
    $region5: #{tpu_custom_call.1} parent=1 // loop_body
      %s27 = ssub.s32 %s22, 1
      %s28 = ssub.s32 %s22, 2
      %s29 = sadd.s32 %s22, 1
      %s30 = ssub.s32 %s22, %s29
      %p31 = scmp.eq.s32.totalorder %s30, 0
      %s33 = sadd.s32 %s32, 1
      %s34 = scalar_select %p31, %s32, %s33
      %p37 = pneg %p31
      %p38 = scmp.eq.s32.totalorder %s22, 1
      %p39 = por %p37, %p38
      %p40 = scmp.ne.s32.totalorder %s32, %s35
      %p41 = scmp.eq.s32.totalorder %s22, 0
      %p42 = por %p40, %p41
      %p43 = scmp.ne.s32.totalorder %s32, %s35
      %p44 = scmp.eq.s32.totalorder %s27, 1
      %p45 = por %p43, %p44
      %p46 = scmp.ne.s32.totalorder %s35, %s36
      %p47 = scmp.eq.s32.totalorder %s27, 0
      %p48 = por %p46, %p47
      %p49 = scmp.ne.s32.totalorder %s35, %s36
      %p50 = scmp.eq.s32.totalorder %s28, 1
      %p51 = por %p49, %p50
      %p53 = scmp.ne.s32.totalorder %s36, %s52
      %p54 = scmp.eq.s32.totalorder %s28, 0
      %p55 = por %p53, %p54
      %s57 = sadd.s32 %s56, 1
      %p60 = scmp.eq.s32.totalorder %s22, 1
      %p61 = scmp.ne.s32.totalorder %s56, %s58
      %p62 = scmp.eq.s32.totalorder %s22, 0
      %p63 = por %p61, %p62
      %p64 = scmp.ne.s32.totalorder %s56, %s58
      %p65 = scmp.eq.s32.totalorder %s27, 1
      %p66 = por %p64, %p65
      %p67 = scmp.ne.s32.totalorder %s58, %s59
      %p68 = scmp.eq.s32.totalorder %s27, 0
      %p69 = por %p67, %p68
      %p70 = scmp.ne.s32.totalorder %s58, %s59
      %p71 = scmp.eq.s32.totalorder %s28, 1
      %p72 = por %p70, %p71
      %p74 = scmp.ne.s32.totalorder %s59, %s73
      %p75 = scmp.eq.s32.totalorder %s28, 0
      %p76 = por %p74, %p75
      %s78 = sadd.s32 %s77, 1
      %p81 = scmp.eq.s32.totalorder %s22, 1
      %p82 = scmp.ne.s32.totalorder %s77, %s79
      %p83 = scmp.eq.s32.totalorder %s22, 0
      %p84 = por %p82, %p83
      %p85 = scmp.ne.s32.totalorder %s77, %s79
      %p86 = scmp.eq.s32.totalorder %s27, 1
      %p87 = por %p85, %p86
      %p88 = scmp.ne.s32.totalorder %s79, %s80
      %p89 = scmp.eq.s32.totalorder %s27, 0
      %p90 = por %p88, %p89
      %p91 = scmp.ne.s32.totalorder %s79, %s80
      %p92 = scmp.eq.s32.totalorder %s28, 1
      %p93 = por %p91, %p92
      %p95 = scmp.ne.s32.totalorder %s80, %s94
      %p96 = scmp.eq.s32.totalorder %s28, 0
      %p97 = por %p95, %p96
      %s99 = sadd.s32 %s98, 1
      %p102 = scmp.eq.s32.totalorder %s22, 1
      %p103 = scmp.ne.s32.totalorder %s98, %s100
      %p104 = scmp.eq.s32.totalorder %s22, 0
      %p105 = por %p103, %p104
      %p106 = scmp.ne.s32.totalorder %s98, %s100
      %p107 = scmp.eq.s32.totalorder %s27, 1
      %p108 = por %p106, %p107
      %p109 = scmp.ne.s32.totalorder %s100, %s101
      %p110 = scmp.eq.s32.totalorder %s27, 0
      %p111 = por %p109, %p110
      %p112 = scmp.ne.s32.totalorder %s100, %s101
      %p113 = scmp.eq.s32.totalorder %s28, 1
      %p114 = por %p112, %p113
      %p116 = scmp.ne.s32.totalorder %s101, %s115
      %p117 = scmp.eq.s32.totalorder %s28, 0
      %p118 = por %p116, %p117
      %s120 = sadd.s32 %s119, 1
      %p123 = scmp.eq.s32.totalorder %s22, 1
      %p124 = scmp.ne.s32.totalorder %s119, %s121
      %p125 = scmp.eq.s32.totalorder %s22, 0
      %p126 = por %p124, %p125
      %p127 = scmp.ne.s32.totalorder %s119, %s121
      %p128 = scmp.eq.s32.totalorder %s27, 1
      %p129 = por %p127, %p128
      %p130 = scmp.ne.s32.totalorder %s121, %s122
      %p131 = scmp.eq.s32.totalorder %s27, 0
      %p132 = por %p130, %p131
      %p133 = scmp.ne.s32.totalorder %s121, %s122
      %p134 = scmp.eq.s32.totalorder %s28, 1
      %p135 = por %p133, %p134
      %p137 = scmp.ne.s32.totalorder %s122, %s136
      %p138 = scmp.eq.s32.totalorder %s28, 0
      %p139 = por %p137, %p138
      %s141 = sadd.s32 %s140, 1
      %p144 = scmp.eq.s32.totalorder %s22, 1
      %p145 = scmp.ne.s32.totalorder %s140, %s142
      %p146 = scmp.eq.s32.totalorder %s22, 0
      %p147 = por %p145, %p146
      %p148 = scmp.ne.s32.totalorder %s140, %s142
      %p149 = scmp.eq.s32.totalorder %s27, 1
      %p150 = por %p148, %p149
      %p151 = scmp.ne.s32.totalorder %s142, %s143
      %p152 = scmp.eq.s32.totalorder %s27, 0
      %p153 = por %p151, %p152
      %p154 = scmp.ne.s32.totalorder %s142, %s143
      %p155 = scmp.eq.s32.totalorder %s28, 1
      %p156 = por %p154, %p155
      %p158 = scmp.ne.s32.totalorder %s143, %s157
      %p159 = scmp.eq.s32.totalorder %s28, 0
      %p160 = por %p158, %p159
      %s162 = sadd.s32 %s161, 1
      %p165 = scmp.eq.s32.totalorder %s22, 1
      %p166 = scmp.ne.s32.totalorder %s161, %s163
      %p167 = scmp.eq.s32.totalorder %s22, 0
      %p168 = por %p166, %p167
      %p169 = scmp.ne.s32.totalorder %s161, %s163
      %p170 = scmp.eq.s32.totalorder %s27, 1
      %p171 = por %p169, %p170
      %p172 = scmp.ne.s32.totalorder %s163, %s164
      %p173 = scmp.eq.s32.totalorder %s27, 0
      %p174 = por %p172, %p173
      %p175 = scmp.ne.s32.totalorder %s163, %s164
      %p176 = scmp.eq.s32.totalorder %s28, 1
      %p177 = por %p175, %p176
      %p179 = scmp.ne.s32.totalorder %s164, %s178
      %p180 = scmp.eq.s32.totalorder %s28, 0
      %p181 = por %p179, %p180
      %s183 = sadd.s32 %s182, 1
      %p186 = scmp.eq.s32.totalorder %s22, 1
      %p187 = scmp.ne.s32.totalorder %s182, %s184
      %p188 = scmp.eq.s32.totalorder %s22, 0
      %p189 = por %p187, %p188
      %p190 = scmp.ne.s32.totalorder %s182, %s184
      %p191 = scmp.eq.s32.totalorder %s27, 1
      %p192 = por %p190, %p191
      %p193 = scmp.ne.s32.totalorder %s184, %s185
      %p194 = scmp.eq.s32.totalorder %s27, 0
      %p195 = por %p193, %p194
      %p196 = scmp.ne.s32.totalorder %s184, %s185
      %p197 = scmp.eq.s32.totalorder %s28, 1
      %p198 = por %p196, %p197
      %p200 = scmp.ne.s32.totalorder %s185, %s199
      %p201 = scmp.eq.s32.totalorder %s28, 0
      %p202 = por %p200, %p201
      %s204 = sadd.s32 %s203, 1
      %p207 = scmp.eq.s32.totalorder %s22, 1
      %p208 = scmp.ne.s32.totalorder %s203, %s205
      %p209 = scmp.eq.s32.totalorder %s22, 0
      %p210 = por %p208, %p209
      %p211 = scmp.ne.s32.totalorder %s203, %s205
      %p212 = scmp.eq.s32.totalorder %s27, 1
      %p213 = por %p211, %p212
      %p214 = scmp.ne.s32.totalorder %s205, %s206
      %p215 = scmp.eq.s32.totalorder %s27, 0
      %p216 = por %p214, %p215
      %p217 = scmp.ne.s32.totalorder %s205, %s206
      %p218 = scmp.eq.s32.totalorder %s28, 1
      %p219 = por %p217, %p218
      %p221 = scmp.ne.s32.totalorder %s206, %s220
      %p222 = scmp.eq.s32.totalorder %s28, 0
      %p223 = por %p221, %p222
      %s224 = ssub.s32 %s22, %s29
      %p225 = scmp.eq.s32.totalorder %s224, 0
      %s227 = sadd.s32 %s226, 1
      %s228 = scalar_select %p225, %s226, %s227
      %p231 = pneg %p225
      %p232 = scmp.eq.s32.totalorder %s22, 1
      %p233 = por %p231, %p232
      %p234 = scmp.ne.s32.totalorder %s226, %s229
      %p235 = scmp.eq.s32.totalorder %s22, 0
      %p236 = por %p234, %p235
      %p237 = scmp.ne.s32.totalorder %s226, %s229
      %p238 = scmp.eq.s32.totalorder %s27, 1
      %p239 = por %p237, %p238
      %p240 = scmp.ne.s32.totalorder %s229, %s230
      %p241 = scmp.eq.s32.totalorder %s27, 0
      %p242 = por %p240, %p241
      %p243 = scmp.ne.s32.totalorder %s229, %s230
      %p244 = scmp.eq.s32.totalorder %s28, 1
      %p245 = por %p243, %p244
      %p247 = scmp.ne.s32.totalorder %s230, %s246
      %p248 = scmp.eq.s32.totalorder %s28, 0
      %p249 = por %p247, %p248
      %p250 = scmp.le.s32.totalorder 1, %s22
      %p251 = scmp.lt.s32.totalorder %s22, 3
      %p252 = pnand %p250, %p251
      %p253 = pneg %p252
      // Predicated region
      $region9: #{tpu_custom_call.1} parent=5 // pred_check
        _
      $region10: #{tpu_custom_call.1} parent=5 // pred_check_branch
        %255 = sbr.rel (%p252) target = $region12
      $region11: #{tpu_custom_call.1} parent=5 // pred_region
        %s256 = ssub.s32 %s22, 1
        // Predicated region
        $region13: #{tpu_custom_call.1} parent=11 // pred_check
          %p257 = pneg %p69
        $region14: #{tpu_custom_call.1} parent=11 // pred_check_branch
          %259 = sbr.rel (%p257) target = $region16
        $region15: #{tpu_custom_call.1} parent=11 // pred_region
          %s261 = ssub.s32 2048, 2048
          %262 = vsyncadd [#allocation6], %s261
          %s263 = sshll.u32 [#allocation5], 4
          %s264 = int_to_ptr.vmem [resolvable:$true] %s263
          %269 = dma.hbm_to_vmem [thread:$0]  %s1, 2048, %s264, [#allocation6], 256, 256, 16
        $region16: #{tpu_custom_call.1} parent=11 // pred_fallthru
          _
        // Predicated region
        $region17: #{tpu_custom_call.1} parent=11 // pred_check
          %p270 = pneg %p90
        $region18: #{tpu_custom_call.1} parent=11 // pred_check_branch
          %272 = sbr.rel (%p270) target = $region20
        $region19: #{tpu_custom_call.1} parent=11 // pred_region
          _
        $region20: #{tpu_custom_call.1} parent=11 // pred_fallthru
          _
        // Predicated region
        $region21: #{tpu_custom_call.1} parent=11 // pred_check
          %p273 = pneg %p111
        $region22: #{tpu_custom_call.1} parent=11 // pred_check_branch
          %275 = sbr.rel (%p273) target = $region24
        $region23: #{tpu_custom_call.1} parent=11 // pred_region
          %s277 = ssub.s32 12800, 12800
          %278 = vsyncadd [#allocation6], %s277
          %s279 = sshll.u32 [#allocation7], 4
          %s280 = int_to_ptr.vmem [resolvable:$true] %s279
          %285 = dma.hbm_to_vmem [thread:$0]  %s3, 12800, %s280, [#allocation6], 256, 256, 16
        $region24: #{tpu_custom_call.1} parent=11 // pred_fallthru
          _
        // Predicated region
        $region25: #{tpu_custom_call.1} parent=11 // pred_check
          %p286 = pneg %p132
        $region26: #{tpu_custom_call.1} parent=11 // pred_check_branch
          %288 = sbr.rel (%p286) target = $region28
        $region27: #{tpu_custom_call.1} parent=11 // pred_region
          _
        $region28: #{tpu_custom_call.1} parent=11 // pred_fallthru
          _
        // Predicated region
        $region29: #{tpu_custom_call.1} parent=11 // pred_check
          %p289 = pneg %p153
        $region30: #{tpu_custom_call.1} parent=11 // pred_check_branch
          %291 = sbr.rel (%p289) target = $region32
        $region31: #{tpu_custom_call.1} parent=11 // pred_region
          %s293 = ssub.s32 12800, 12800
          %294 = vsyncadd [#allocation9], %s293
          %s295 = sshll.u32 [#allocation8], 4
          %s296 = int_to_ptr.vmem [resolvable:$true] %s295
          %301 = dma.hbm_to_vmem [thread:$0]  %s5, 12800, %s296, [#allocation9], 256, 256, 16
        $region32: #{tpu_custom_call.1} parent=11 // pred_fallthru
          _
        // Predicated region
        $region33: #{tpu_custom_call.1} parent=11 // pred_check
          %p302 = pneg %p174
        $region34: #{tpu_custom_call.1} parent=11 // pred_check_branch
          %304 = sbr.rel (%p302) target = $region36
        $region35: #{tpu_custom_call.1} parent=11 // pred_region
          _
        $region36: #{tpu_custom_call.1} parent=11 // pred_fallthru
          _
        // Predicated region
        $region37: #{tpu_custom_call.1} parent=11 // pred_check
          %p305 = pneg %p195
        $region38: #{tpu_custom_call.1} parent=11 // pred_check_branch
          %307 = sbr.rel (%p305) target = $region40
        $region39: #{tpu_custom_call.1} parent=11 // pred_region
          _
        $region40: #{tpu_custom_call.1} parent=11 // pred_fallthru
          _
        // Predicated region
        $region41: #{tpu_custom_call.1} parent=11 // pred_check
          %p308 = pneg %p216
        $region42: #{tpu_custom_call.1} parent=11 // pred_check_branch
          %310 = sbr.rel (%p308) target = $region44
        $region43: #{tpu_custom_call.1} parent=11 // pred_region
          _
        $region44: #{tpu_custom_call.1} parent=11 // pred_fallthru
          _
      $region12: #{tpu_custom_call.1} parent=5 // pred_fallthru
        _
      %p311 = scmp.lt.s32.totalorder %s22, 2
      // Predicated region
      $region45: #{tpu_custom_call.1} parent=5 // pred_check
        %p312 = pneg %p311
      $region46: #{tpu_custom_call.1} parent=5 // pred_check_branch
        %314 = sbr.rel (%p312) target = $region48
      $region47: #{tpu_custom_call.1} parent=5 // pred_region
        // Predicated region
        $region49: #{tpu_custom_call.1} parent=47 // pred_check
          %p315 = pneg %p42
        $region50: #{tpu_custom_call.1} parent=47 // pred_check_branch
          %317 = sbr.rel (%p315) target = $region52
        $region51: #{tpu_custom_call.1} parent=47 // pred_region
          %s318 = sand.u32 %s32, 1
          %s319 = scalar_lea.sflag [#allocation4], %s318
          %s320 = sand.u32 %s32, 1
          %s321 = smul.addr %s320, 8
          %s322 = scalar_lea.vmem [#allocation3], %s321
          %s324 = ssub.s32 128, 128
          %325 = vsyncadd %s319, %s324
          %s326 = smul.addr %s22, 128
          %s327 = scalar_lea.hbm %s0, %s326
          %s329 = sshll.u32 %s322, 4
          %s330 = int_to_ptr.vmem [resolvable:$true] %s329
          %332 = dma.hbm_to_vmem [thread:$0]  %s327, 128, %s330, %s319
        $region52: #{tpu_custom_call.1} parent=47 // pred_fallthru
          _
      $region48: #{tpu_custom_call.1} parent=5 // pred_fallthru
        _
      %p333 = scmp.le.s32.totalorder 1, %s22
      %p334 = scmp.lt.s32.totalorder %s22, 3
      %p335 = pnand %p333, %p334
      %p336 = pneg %p335
      // Predicated region
      $region53: #{tpu_custom_call.1} parent=5 // pred_check
        _
      $region54: #{tpu_custom_call.1} parent=5 // pred_check_branch
        %338 = sbr.rel (%p335) target = $region56
      $region55: #{tpu_custom_call.1} parent=5 // pred_region
        %s339 = ssub.s32 %s22, 1
        %s340 = sand.u32 %s35, 1
        %s341 = scalar_lea.sflag [#allocation4], %s340
        %s342 = sand.u32 %s35, 1
        %s343 = smul.addr %s342, 8
        %s344 = scalar_lea.vmem [#allocation3], %s343
        // Predicated region
        $region57: #{tpu_custom_call.1} parent=55 // pred_check
          %p345 = pneg %p48
        $region58: #{tpu_custom_call.1} parent=55 // pred_check_branch
          %347 = sbr.rel (%p345) target = $region60
        $region59: #{tpu_custom_call.1} parent=55 // pred_region
          %348 = dma.done %s341, 128
        $region60: #{tpu_custom_call.1} parent=55 // pred_fallthru
          _
        // Predicated region
        $region61: #{tpu_custom_call.1} parent=55 // pred_check
          %p349 = pneg %p69
        $region62: #{tpu_custom_call.1} parent=55 // pred_check_branch
          %351 = sbr.rel (%p349) target = $region64
        $region63: #{tpu_custom_call.1} parent=55 // pred_region
          %352 = dma.done [#allocation6], 2048
        $region64: #{tpu_custom_call.1} parent=55 // pred_fallthru
          _
        // Predicated region
        $region65: #{tpu_custom_call.1} parent=55 // pred_check
          %p353 = pneg %p111
        $region66: #{tpu_custom_call.1} parent=55 // pred_check_branch
          %355 = sbr.rel (%p353) target = $region68
        $region67: #{tpu_custom_call.1} parent=55 // pred_region
          %356 = dma.done [#allocation6], 12800
        $region68: #{tpu_custom_call.1} parent=55 // pred_fallthru
          _
        // Predicated region
        $region69: #{tpu_custom_call.1} parent=55 // pred_check
          %p357 = pneg %p153
        $region70: #{tpu_custom_call.1} parent=55 // pred_check_branch
          %359 = sbr.rel (%p357) target = $region72
        $region71: #{tpu_custom_call.1} parent=55 // pred_region
          %360 = dma.done [#allocation9], 12800
        $region72: #{tpu_custom_call.1} parent=55 // pred_fallthru
          _
        %s361 = sand.u32 %s35, 1
        %s362 = scalar_lea.sflag [#allocation4], %s361
        %s363 = sand.u32 %s35, 1
        %s364 = smul.addr %s363, 8
        %s365 = scalar_lea.vmem [#allocation3], %s364
        %p366 = pneg %p48
        %p367 = pneg %p45
        %p368 = pneg %p69
        %p369 = pneg %p66
        %p370 = pneg %p90
        %p371 = pneg %p87
        %p372 = pneg %p111
        %p373 = pneg %p108
        %p374 = pneg %p132
        %p375 = pneg %p129
        %p376 = pneg %p153
        %p377 = pneg %p150
        %p378 = pneg %p174
        %p379 = pneg %p171
        %p380 = pneg %p195
        %p381 = pneg %p192
        %p382 = pneg %p216
        %p383 = pneg %p213
        %p384 = pneg %p242
        %p385 = pneg %p239
        %p386 = scmp.lt.s32.totalorder %s27, 1
        %s387 = scalar_select %p386, %s27, 1
        %s388 = smul.addr %s387, 8
        %s389 = scalar_lea.vmem %s9, %s388
        %p390 = scmp.lt.s32.totalorder %s27, 1
        %s391 = scalar_select %p390, %s27, 1
        %s392 = smul.addr %s391, 8
        %s393 = scalar_lea.vmem %s9, %s392
        %v395 = vld [vmem:[%s344] sm:$0xff]
        %v396 = vpack.c.bf16 %v395, %v395
        %v397 = vld [vmem:[#allocation5] sm:$0xff]
        %v398 = vld [vmem:[#allocation5 + $0x8] sm:$0xff]
        %v399 = vld [vmem:[#allocation5 + $0x10] sm:$0xff]
        %v400 = vld [vmem:[#allocation5 + $0x18] sm:$0xff]
        %v401 = vld [vmem:[#allocation5 + $0x20] sm:$0xff]
        %v402 = vld [vmem:[#allocation5 + $0x28] sm:$0xff]
        %v403 = vld [vmem:[#allocation5 + $0x30] sm:$0xff]
        %v404 = vld [vmem:[#allocation5 + $0x38] sm:$0xff]
        %v405 = vld [vmem:[#allocation5 + $0x40] sm:$0xff]
        %v406 = vld [vmem:[#allocation5 + $0x48] sm:$0xff]
        %v407 = vld [vmem:[#allocation5 + $0x50] sm:$0xff]
        %v408 = vld [vmem:[#allocation5 + $0x58] sm:$0xff]
        %v409 = vld [vmem:[#allocation5 + $0x60] sm:$0xff]
        %v410 = vld [vmem:[#allocation5 + $0x68] sm:$0xff]
        %v411 = vld [vmem:[#allocation5 + $0x70] sm:$0xff]
        %v412 = vld [vmem:[#allocation5 + $0x78] sm:$0xff]
        %v413 = vld [vmem:[%s2] sm:$0xf]
        %v415 = vlaneseq
        %v416 = vshrl.u32 %v415, 7
        %v417 = vsub.s32 0, %v416
        %v418 = vrot.slane %v413, %v417
        %v419 = vlaneseq
        %v420 = vshrl.u32 %v419, 7
        %v421 = vsub.s32 1, %v420
        %v422 = vrot.slane %v413, %v421
        %v423 = vlaneseq
        %v424 = vshrl.u32 %v423, 7
        %v425 = vsub.s32 2, %v424
        %v426 = vrot.slane %v413, %v425
        %v427 = vlaneseq
        %v428 = vshrl.u32 %v427, 7
        %v429 = vsub.s32 3, %v428
        %v430 = vrot.slane %v413, %v429
        %v451 = vunpack.c.l.b16 %v397
        %v452 = vunpack.c.h.b16 %v397
        %v453 = vunpack.c.l.b16 %v398
        %v454 = vunpack.c.h.b16 %v398
        %v455 = vunpack.c.l.b16 %v399
        %v456 = vunpack.c.h.b16 %v399
        %v457 = vunpack.c.l.b16 %v400
        %v458 = vunpack.c.h.b16 %v400
        %v459 = vunpack.c.l.b16 %v401
        %v460 = vunpack.c.h.b16 %v401
        %v461 = vunpack.c.l.b16 %v402
        %v462 = vunpack.c.h.b16 %v402
        %v463 = vunpack.c.l.b16 %v403
        %v464 = vunpack.c.h.b16 %v403
        %v465 = vunpack.c.l.b16 %v404
        %v466 = vunpack.c.h.b16 %v404
        %v467 = vunpack.c.l.b16 %v405
        %v468 = vunpack.c.h.b16 %v405
        %v469 = vunpack.c.l.b16 %v406
        %v470 = vunpack.c.h.b16 %v406
        %v471 = vunpack.c.l.b16 %v407
        %v472 = vunpack.c.h.b16 %v407
        %v473 = vunpack.c.l.b16 %v408
        %v474 = vunpack.c.h.b16 %v408
        %v475 = vunpack.c.l.b16 %v409
        %v476 = vunpack.c.h.b16 %v409
        %v477 = vunpack.c.l.b16 %v410
        %v478 = vunpack.c.h.b16 %v410
        %v479 = vunpack.c.l.b16 %v411
        %v480 = vunpack.c.h.b16 %v411
        %v481 = vunpack.c.l.b16 %v412
        %v482 = vunpack.c.h.b16 %v412
        %v483 = vpack.c.b16 %v455, %v451
        %v484 = vpack.c.b16 %v456, %v452
        %v485 = vpack.c.b16 %v457, %v453
        %v486 = vpack.c.b16 %v458, %v454
        %v487 = vpack.c.b16 %v463, %v459
        %v488 = vpack.c.b16 %v464, %v460
        %v489 = vpack.c.b16 %v465, %v461
        %v490 = vpack.c.b16 %v466, %v462
        %v491 = vpack.c.b16 %v471, %v467
        %v492 = vpack.c.b16 %v472, %v468
        %v493 = vpack.c.b16 %v473, %v469
        %v494 = vpack.c.b16 %v474, %v470
        %v495 = vpack.c.b16 %v479, %v475
        %v496 = vpack.c.b16 %v480, %v476
        %v497 = vpack.c.b16 %v481, %v477
        %v498 = vpack.c.b16 %v482, %v478
        %vm515 = vcmask 523264
        %v517 = vsel %vm515, %v396, 0
        %519 = vmatprep.subr.bf16.mxu0 %v484
        %520 = vmatpush1.bf16.msra.mxu0 %v483
        %521 = vmatprep.subr.bf16.mxu0 %v488
        %522 = vmatpush1.bf16.msra.mxu0 %v487
        %523 = vmatprep.subr.bf16.mxu0 %v492
        %524 = vmatpush1.bf16.msra.mxu0 %v491
        %525 = vmatprep.subr.bf16.mxu0 %v496
        %526 = vmatpush1.bf16.msra.mxu0 %v495
        %527 = vmatprep.subr.bf16.mxu0 0
        %528 = vmatpush1.bf16.msra.mxu0 0
        %529 = vmatprep.subr.bf16.mxu0 0
        %530 = vmatpush1.bf16.msra.mxu0 0
        %531 = vmatprep.subr.bf16.mxu0 0
        %532 = vmatpush1.bf16.msra.mxu0 0
        %533 = vmatprep.subr.bf16.mxu0 0
        %534 = vmatpush1.bf16.msra.mxu0 0
        %535 = vmatprep.subr.bf16.mxu0 0
        %536 = vmatpush1.bf16.msra.mxu0 0
        %537 = vmatprep.subr.bf16.mxu0 0
        %538 = vmatpush1.bf16.msra.mxu0 0
        %539 = vmatprep.subr.bf16.mxu0 0
        %540 = vmatpush1.bf16.msra.mxu0 0
        %541 = vmatprep.subr.bf16.mxu0 0
        %542 = vmatpush1.bf16.msra.mxu0 0
        %543 = vmatprep.subr.bf16.mxu0 0
        %544 = vmatpush1.bf16.msra.mxu0 0
        %545 = vmatprep.subr.bf16.mxu0 0
        %546 = vmatpush1.bf16.msra.mxu0 0
        %547 = vmatprep.subr.bf16.mxu0 0
        %548 = vmatpush1.bf16.msra.mxu0 0
        %549 = vmatprep.subr.bf16.mxu0 0
        %550 = vmatpush1.bf16.msra.mxu0 0
        %551 = vmatprep.mubr.bf16.mxu0 0
        %552 = vmatmul.mubr.bf16.gmra.mrb[0].mxu0 %v517
        %v553 = vpop.f32.mrb[0].mxu0
        %v554 = vadd.f32 %v418, %v553
        %v555 = vpop.f32.mrb[0].mxu0
        %v556 = vadd.f32 %v422, %v555
        %v557 = vpop.f32.mrb[0].mxu0
        %v558 = vpop.f32.mrb[0].mxu0
        %559 = vdwg.mxu0
        %560 = vmatprep.subr.bf16.mxu0 %v486
        %561 = vmatpush1.bf16.msra.mxu0 %v485
        %562 = vmatprep.subr.bf16.mxu0 %v490
        %563 = vmatpush1.bf16.msra.mxu0 %v489
        %564 = vmatprep.subr.bf16.mxu0 %v494
        %565 = vmatpush1.bf16.msra.mxu0 %v493
        %566 = vmatprep.subr.bf16.mxu0 %v498
        %567 = vmatpush1.bf16.msra.mxu0 %v497
        %568 = vmatprep.subr.bf16.mxu0 0
        %569 = vmatpush1.bf16.msra.mxu0 0
        %570 = vmatprep.subr.bf16.mxu0 0
        %571 = vmatpush1.bf16.msra.mxu0 0
        %572 = vmatprep.subr.bf16.mxu0 0
        %573 = vmatpush1.bf16.msra.mxu0 0
        %574 = vmatprep.subr.bf16.mxu0 0
        %575 = vmatpush1.bf16.msra.mxu0 0
        %576 = vmatprep.subr.bf16.mxu0 0
        %577 = vmatpush1.bf16.msra.mxu0 0
        %578 = vmatprep.subr.bf16.mxu0 0
        %579 = vmatpush1.bf16.msra.mxu0 0
        %580 = vmatprep.subr.bf16.mxu0 0
        %581 = vmatpush1.bf16.msra.mxu0 0
        %582 = vmatprep.subr.bf16.mxu0 0
        %583 = vmatpush1.bf16.msra.mxu0 0
        %584 = vmatprep.subr.bf16.mxu0 0
        %585 = vmatpush1.bf16.msra.mxu0 0
        %586 = vmatprep.subr.bf16.mxu0 0
        %587 = vmatpush1.bf16.msra.mxu0 0
        %588 = vmatprep.subr.bf16.mxu0 0
        %589 = vmatpush1.bf16.msra.mxu0 0
        %590 = vmatprep.subr.bf16.mxu0 0
        %591 = vmatpush1.bf16.msra.mxu0 0
        %592 = vmatprep.mubr.bf16.mxu0 0
        %593 = vmatmul.mubr.bf16.gmra.mrb[0].mxu0 %v517
        %v594 = vpop.f32.mrb[0].mxu0
        %v595 = vadd.f32 %v426, %v594
        %v596 = vpop.f32.mrb[0].mxu0
        %v597 = vadd.f32 %v430, %v596
        %v598 = vpop.f32.mrb[0].mxu0
        %v599 = vpop.f32.mrb[0].mxu0
        %600 = vdwg.mxu0
        %v601 = vmax.f32 %v554, 0.0
        %v602 = vmax.f32 %v556, 0.0
        %v603 = vmax.f32 %v595, 0.0
        %v604 = vmax.f32 %v597, 0.0
        %v605 = vpack.c.bf16 %v601, %v601
        %v606 = vpack.c.bf16 %v602, %v602
        %v607 = vpack.c.bf16 %v603, %v603
        %v608 = vpack.c.bf16 %v604, %v604
        %v609 = vld [vmem:[#allocation7] sm:$0xff]
        %v610 = vld [vmem:[#allocation7 + $0x8] sm:$0xff]
        %v611 = vld [vmem:[#allocation7 + $0x10] sm:$0xff]
        %v612 = vld [vmem:[#allocation7 + $0x18] sm:$0xff]
        %v613 = vld [vmem:[#allocation7 + $0x20] sm:$0xff]
        %v614 = vld [vmem:[#allocation7 + $0x28] sm:$0xff]
        %v615 = vld [vmem:[#allocation7 + $0x30] sm:$0xff]
        %v616 = vld [vmem:[#allocation7 + $0x38] sm:$0xff]
        %v617 = vld [vmem:[#allocation7 + $0x40] sm:$0xff]
        %v618 = vld [vmem:[#allocation7 + $0x48] sm:$0xff]
        %v619 = vld [vmem:[#allocation7 + $0x50] sm:$0xff]
        %v620 = vld [vmem:[#allocation7 + $0x58] sm:$0xff]
        %v621 = vld [vmem:[#allocation7 + $0x60] sm:$0xff]
        %v622 = vld [vmem:[#allocation7 + $0x68] sm:$0xff]
        %v623 = vld [vmem:[#allocation7 + $0x70] sm:$0xff]
        %v624 = vld [vmem:[#allocation7 + $0x78] sm:$0xff]
        %v625 = vld [vmem:[#allocation7 + $0x80] sm:$0xff]
        %v626 = vld [vmem:[#allocation7 + $0x88] sm:$0xff]
        %v627 = vld [vmem:[#allocation7 + $0x90] sm:$0xff]
        %v628 = vld [vmem:[#allocation7 + $0x98] sm:$0xff]
        %v629 = vld [vmem:[#allocation7 + $0xa0] sm:$0xff]
        %v630 = vld [vmem:[#allocation7 + $0xa8] sm:$0xff]
        %v631 = vld [vmem:[#allocation7 + $0xb0] sm:$0xff]
        %v632 = vld [vmem:[#allocation7 + $0xb8] sm:$0xff]
        %v633 = vld [vmem:[#allocation7 + $0xc0] sm:$0xff]
        %v634 = vld [vmem:[#allocation7 + $0xc8] sm:$0xff]
        %v635 = vld [vmem:[#allocation7 + $0xd0] sm:$0xff]
        %v636 = vld [vmem:[#allocation7 + $0xd8] sm:$0xff]
        %v637 = vld [vmem:[#allocation7 + $0xe0] sm:$0xff]
        %v638 = vld [vmem:[#allocation7 + $0xe8] sm:$0xff]
        %v639 = vld [vmem:[#allocation7 + $0xf0] sm:$0xff]
        %v640 = vld [vmem:[#allocation7 + $0xf8] sm:$0xff]
        %v641 = vld [vmem:[#allocation7 + $0x100] sm:$0xff]
        %v642 = vld [vmem:[#allocation7 + $0x108] sm:$0xff]
        %v643 = vld [vmem:[#allocation7 + $0x110] sm:$0xff]
        %v644 = vld [vmem:[#allocation7 + $0x118] sm:$0xff]
        %v645 = vld [vmem:[#allocation7 + $0x120] sm:$0xff]
        %v646 = vld [vmem:[#allocation7 + $0x128] sm:$0xff]
        %v647 = vld [vmem:[#allocation7 + $0x130] sm:$0xff]
        %v648 = vld [vmem:[#allocation7 + $0x138] sm:$0xff]
        %v649 = vld [vmem:[#allocation7 + $0x140] sm:$0xff]
        %v650 = vld [vmem:[#allocation7 + $0x148] sm:$0xff]
        %v651 = vld [vmem:[#allocation7 + $0x150] sm:$0xff]
        %v652 = vld [vmem:[#allocation7 + $0x158] sm:$0xff]
        %v653 = vld [vmem:[#allocation7 + $0x160] sm:$0xff]
        %v654 = vld [vmem:[#allocation7 + $0x168] sm:$0xff]
        %v655 = vld [vmem:[#allocation7 + $0x170] sm:$0xff]
        %v656 = vld [vmem:[#allocation7 + $0x178] sm:$0xff]
        %v657 = vld [vmem:[#allocation7 + $0x180] sm:$0xff]
        %v658 = vld [vmem:[#allocation7 + $0x188] sm:$0xff]
        %v659 = vld [vmem:[#allocation7 + $0x190] sm:$0xff]
        %v660 = vld [vmem:[#allocation7 + $0x198] sm:$0xff]
        %v661 = vld [vmem:[#allocation7 + $0x1a0] sm:$0xff]
        %v662 = vld [vmem:[#allocation7 + $0x1a8] sm:$0xff]
        %v663 = vld [vmem:[#allocation7 + $0x1b0] sm:$0xff]
        %v664 = vld [vmem:[#allocation7 + $0x1b8] sm:$0xff]
        %v665 = vld [vmem:[#allocation7 + $0x1c0] sm:$0xff]
        %v666 = vld [vmem:[#allocation7 + $0x1c8] sm:$0xff]
        %v667 = vld [vmem:[#allocation7 + $0x1d0] sm:$0xff]
        %v668 = vld [vmem:[#allocation7 + $0x1d8] sm:$0xff]
        %v669 = vld [vmem:[#allocation7 + $0x1e0] sm:$0xff]
        %v670 = vld [vmem:[#allocation7 + $0x1e8] sm:$0xff]
        %v671 = vld [vmem:[#allocation7 + $0x1f0] sm:$0xff]
        %v672 = vld [vmem:[#allocation7 + $0x1f8] sm:$0xff]
        %v673 = vld [vmem:[#allocation7 + $0x200] sm:$0xff]
        %v674 = vld [vmem:[#allocation7 + $0x208] sm:$0xff]
        %v675 = vld [vmem:[#allocation7 + $0x210] sm:$0xff]
        %v676 = vld [vmem:[#allocation7 + $0x218] sm:$0xff]
        %v677 = vld [vmem:[#allocation7 + $0x220] sm:$0xff]
        %v678 = vld [vmem:[#allocation7 + $0x228] sm:$0xff]
        %v679 = vld [vmem:[#allocation7 + $0x230] sm:$0xff]
        %v680 = vld [vmem:[#allocation7 + $0x238] sm:$0xff]
        %v681 = vld [vmem:[#allocation7 + $0x240] sm:$0xff]
        %v682 = vld [vmem:[#allocation7 + $0x248] sm:$0xff]
        %v683 = vld [vmem:[#allocation7 + $0x250] sm:$0xff]
        %v684 = vld [vmem:[#allocation7 + $0x258] sm:$0xff]
        %v685 = vld [vmem:[#allocation7 + $0x260] sm:$0xff]
        %v686 = vld [vmem:[#allocation7 + $0x268] sm:$0xff]
        %v687 = vld [vmem:[#allocation7 + $0x270] sm:$0xff]
        %v688 = vld [vmem:[#allocation7 + $0x278] sm:$0xff]
        %v689 = vld [vmem:[#allocation7 + $0x280] sm:$0xff]
        %v690 = vld [vmem:[#allocation7 + $0x288] sm:$0xff]
        %v691 = vld [vmem:[#allocation7 + $0x290] sm:$0xff]
        %v692 = vld [vmem:[#allocation7 + $0x298] sm:$0xff]
        %v693 = vld [vmem:[#allocation7 + $0x2a0] sm:$0xff]
        %v694 = vld [vmem:[#allocation7 + $0x2a8] sm:$0xff]
        %v695 = vld [vmem:[#allocation7 + $0x2b0] sm:$0xff]
        %v696 = vld [vmem:[#allocation7 + $0x2b8] sm:$0xff]
        %v697 = vld [vmem:[#allocation7 + $0x2c0] sm:$0xff]
        %v698 = vld [vmem:[#allocation7 + $0x2c8] sm:$0xff]
        %v699 = vld [vmem:[#allocation7 + $0x2d0] sm:$0xff]
        %v700 = vld [vmem:[#allocation7 + $0x2d8] sm:$0xff]
        %v701 = vld [vmem:[#allocation7 + $0x2e0] sm:$0xff]
        %v702 = vld [vmem:[#allocation7 + $0x2e8] sm:$0xff]
        %v703 = vld [vmem:[#allocation7 + $0x2f0] sm:$0xff]
        %v704 = vld [vmem:[#allocation7 + $0x2f8] sm:$0xff]
        %v705 = vld [vmem:[#allocation7 + $0x300] sm:$0xff]
        %v706 = vld [vmem:[#allocation7 + $0x308] sm:$0xff]
        %v707 = vld [vmem:[#allocation7 + $0x310] sm:$0xff]
        %v708 = vld [vmem:[#allocation7 + $0x318] sm:$0xff]
        %v709 = vld [vmem:[%s4] sm:$0xf]
        %v711 = vlaneseq
        %v712 = vshrl.u32 %v711, 7
        %v713 = vsub.s32 0, %v712
        %v714 = vrot.slane %v709, %v713
        %v715 = vlaneseq
        %v716 = vshrl.u32 %v715, 7
        %v717 = vsub.s32 1, %v716
        %v718 = vrot.slane %v709, %v717
        %v719 = vlaneseq
        %v720 = vshrl.u32 %v719, 7
        %v721 = vsub.s32 2, %v720
        %v722 = vrot.slane %v709, %v721
        %v723 = vlaneseq
        %v724 = vshrl.u32 %v723, 7
        %v725 = vsub.s32 3, %v724
        %v726 = vrot.slane %v709, %v725
        %v831 = vunpack.c.l.b16 %v609
        %v832 = vunpack.c.h.b16 %v609
        %v833 = vunpack.c.l.b16 %v610
        %v834 = vunpack.c.h.b16 %v610
        %v835 = vunpack.c.l.b16 %v611
        %v836 = vunpack.c.h.b16 %v611
        %v837 = vunpack.c.l.b16 %v612
        %v838 = vunpack.c.h.b16 %v612
        %v839 = vunpack.c.l.b16 %v613
        %v840 = vunpack.c.h.b16 %v613
        %v841 = vunpack.c.l.b16 %v614
        %v842 = vunpack.c.h.b16 %v614
        %v843 = vunpack.c.l.b16 %v615
        %v844 = vunpack.c.h.b16 %v615
        %v845 = vunpack.c.l.b16 %v616
        %v846 = vunpack.c.h.b16 %v616
        %v847 = vunpack.c.l.b16 %v617
        %v848 = vunpack.c.h.b16 %v617
        %v849 = vunpack.c.l.b16 %v618
        %v850 = vunpack.c.h.b16 %v618
        %v851 = vunpack.c.l.b16 %v619
        %v852 = vunpack.c.h.b16 %v619
        %v853 = vunpack.c.l.b16 %v620
        %v854 = vunpack.c.h.b16 %v620
        %v855 = vunpack.c.l.b16 %v621
        %v856 = vunpack.c.h.b16 %v621
        %v857 = vunpack.c.l.b16 %v622
        %v858 = vunpack.c.h.b16 %v622
        %v859 = vunpack.c.l.b16 %v623
        %v860 = vunpack.c.h.b16 %v623
        %v861 = vunpack.c.l.b16 %v624
        %v862 = vunpack.c.h.b16 %v624
        %v863 = vunpack.c.l.b16 %v625
        %v864 = vunpack.c.h.b16 %v625
        %v865 = vunpack.c.l.b16 %v626
        %v866 = vunpack.c.h.b16 %v626
        %v867 = vunpack.c.l.b16 %v627
        %v868 = vunpack.c.h.b16 %v627
        %v869 = vunpack.c.l.b16 %v628
        %v870 = vunpack.c.h.b16 %v628
        %v871 = vunpack.c.l.b16 %v629
        %v872 = vunpack.c.h.b16 %v629
        %v873 = vunpack.c.l.b16 %v630
        %v874 = vunpack.c.h.b16 %v630
        %v875 = vunpack.c.l.b16 %v631
        %v876 = vunpack.c.h.b16 %v631
        %v877 = vunpack.c.l.b16 %v632
        %v878 = vunpack.c.h.b16 %v632
        %v879 = vunpack.c.l.b16 %v633
        %v880 = vunpack.c.h.b16 %v633
        %v881 = vunpack.c.l.b16 %v634
        %v882 = vunpack.c.h.b16 %v634
        %v883 = vunpack.c.l.b16 %v635
        %v884 = vunpack.c.h.b16 %v635
        %v885 = vunpack.c.l.b16 %v636
        %v886 = vunpack.c.h.b16 %v636
        %v887 = vunpack.c.l.b16 %v637
        %v888 = vunpack.c.h.b16 %v637
        %v889 = vunpack.c.l.b16 %v638
        %v890 = vunpack.c.h.b16 %v638
        %v891 = vunpack.c.l.b16 %v639
        %v892 = vunpack.c.h.b16 %v639
        %v893 = vunpack.c.l.b16 %v640
        %v894 = vunpack.c.h.b16 %v640
        %v895 = vunpack.c.l.b16 %v641
        %v896 = vunpack.c.h.b16 %v641
        %v897 = vunpack.c.l.b16 %v642
        %v898 = vunpack.c.h.b16 %v642
        %v899 = vunpack.c.l.b16 %v643
        %v900 = vunpack.c.h.b16 %v643
        %v901 = vunpack.c.l.b16 %v644
        %v902 = vunpack.c.h.b16 %v644
        %v903 = vunpack.c.l.b16 %v645
        %v904 = vunpack.c.h.b16 %v645
        %v905 = vunpack.c.l.b16 %v646
        %v906 = vunpack.c.h.b16 %v646
        %v907 = vunpack.c.l.b16 %v647
        %v908 = vunpack.c.h.b16 %v647
        %v909 = vunpack.c.l.b16 %v648
        %v910 = vunpack.c.h.b16 %v648
        %v911 = vunpack.c.l.b16 %v649
        %v912 = vunpack.c.h.b16 %v649
        %v913 = vunpack.c.l.b16 %v650
        %v914 = vunpack.c.h.b16 %v650
        %v915 = vunpack.c.l.b16 %v651
        %v916 = vunpack.c.h.b16 %v651
        %v917 = vunpack.c.l.b16 %v652
        %v918 = vunpack.c.h.b16 %v652
        %v919 = vunpack.c.l.b16 %v653
        %v920 = vunpack.c.h.b16 %v653
        %v921 = vunpack.c.l.b16 %v654
        %v922 = vunpack.c.h.b16 %v654
        %v923 = vunpack.c.l.b16 %v655
        %v924 = vunpack.c.h.b16 %v655
        %v925 = vunpack.c.l.b16 %v656
        %v926 = vunpack.c.h.b16 %v656
        %v927 = vunpack.c.l.b16 %v657
        %v928 = vunpack.c.h.b16 %v657
        %v929 = vunpack.c.l.b16 %v658
        %v930 = vunpack.c.h.b16 %v658
        %v931 = vunpack.c.l.b16 %v659
        %v932 = vunpack.c.h.b16 %v659
        %v933 = vunpack.c.l.b16 %v660
        %v934 = vunpack.c.h.b16 %v660
        %v935 = vunpack.c.l.b16 %v661
        %v936 = vunpack.c.h.b16 %v661
        %v937 = vunpack.c.l.b16 %v662
        %v938 = vunpack.c.h.b16 %v662
        %v939 = vunpack.c.l.b16 %v663
        %v940 = vunpack.c.h.b16 %v663
        %v941 = vunpack.c.l.b16 %v664
        %v942 = vunpack.c.h.b16 %v664
        %v943 = vunpack.c.l.b16 %v665
        %v944 = vunpack.c.h.b16 %v665
        %v945 = vunpack.c.l.b16 %v666
        %v946 = vunpack.c.h.b16 %v666
        %v947 = vunpack.c.l.b16 %v667
        %v948 = vunpack.c.h.b16 %v667
        %v949 = vunpack.c.l.b16 %v668
        %v950 = vunpack.c.h.b16 %v668
        %v951 = vunpack.c.l.b16 %v669
        %v952 = vunpack.c.h.b16 %v669
        %v953 = vunpack.c.l.b16 %v670
        %v954 = vunpack.c.h.b16 %v670
        %v955 = vunpack.c.l.b16 %v671
        %v956 = vunpack.c.h.b16 %v671
        %v957 = vunpack.c.l.b16 %v672
        %v958 = vunpack.c.h.b16 %v672
        %v959 = vunpack.c.l.b16 %v673
        %v960 = vunpack.c.h.b16 %v673
        %v961 = vunpack.c.l.b16 %v674
        %v962 = vunpack.c.h.b16 %v674
        %v963 = vunpack.c.l.b16 %v675
        %v964 = vunpack.c.h.b16 %v675
        %v965 = vunpack.c.l.b16 %v676
        %v966 = vunpack.c.h.b16 %v676
        %v967 = vunpack.c.l.b16 %v677
        %v968 = vunpack.c.h.b16 %v677
        %v969 = vunpack.c.l.b16 %v678
        %v970 = vunpack.c.h.b16 %v678
        %v971 = vunpack.c.l.b16 %v679
        %v972 = vunpack.c.h.b16 %v679
        %v973 = vunpack.c.l.b16 %v680
        %v974 = vunpack.c.h.b16 %v680
        %v975 = vunpack.c.l.b16 %v681
        %v976 = vunpack.c.h.b16 %v681
        %v977 = vunpack.c.l.b16 %v682
        %v978 = vunpack.c.h.b16 %v682
        %v979 = vunpack.c.l.b16 %v683
        %v980 = vunpack.c.h.b16 %v683
        %v981 = vunpack.c.l.b16 %v684
        %v982 = vunpack.c.h.b16 %v684
        %v983 = vunpack.c.l.b16 %v685
        %v984 = vunpack.c.h.b16 %v685
        %v985 = vunpack.c.l.b16 %v686
        %v986 = vunpack.c.h.b16 %v686
        %v987 = vunpack.c.l.b16 %v687
        %v988 = vunpack.c.h.b16 %v687
        %v989 = vunpack.c.l.b16 %v688
        %v990 = vunpack.c.h.b16 %v688
        %v991 = vunpack.c.l.b16 %v689
        %v992 = vunpack.c.h.b16 %v689
        %v993 = vunpack.c.l.b16 %v690
        %v994 = vunpack.c.h.b16 %v690
        %v995 = vunpack.c.l.b16 %v691
        %v996 = vunpack.c.h.b16 %v691
        %v997 = vunpack.c.l.b16 %v692
        %v998 = vunpack.c.h.b16 %v692
        %v999 = vunpack.c.l.b16 %v693
        %v1000 = vunpack.c.h.b16 %v693
        %v1001 = vunpack.c.l.b16 %v694
        %v1002 = vunpack.c.h.b16 %v694
        %v1003 = vunpack.c.l.b16 %v695
        %v1004 = vunpack.c.h.b16 %v695
        %v1005 = vunpack.c.l.b16 %v696
        %v1006 = vunpack.c.h.b16 %v696
        %v1007 = vunpack.c.l.b16 %v697
        %v1008 = vunpack.c.h.b16 %v697
        %v1009 = vunpack.c.l.b16 %v698
        %v1010 = vunpack.c.h.b16 %v698
        %v1011 = vunpack.c.l.b16 %v699
        %v1012 = vunpack.c.h.b16 %v699
        %v1013 = vunpack.c.l.b16 %v700
        %v1014 = vunpack.c.h.b16 %v700
        %v1015 = vunpack.c.l.b16 %v701
        %v1016 = vunpack.c.h.b16 %v701
        %v1017 = vunpack.c.l.b16 %v702
        %v1018 = vunpack.c.h.b16 %v702
        %v1019 = vunpack.c.l.b16 %v703
        %v1020 = vunpack.c.h.b16 %v703
        %v1021 = vunpack.c.l.b16 %v704
        %v1022 = vunpack.c.h.b16 %v704
        %v1023 = vunpack.c.l.b16 %v705
        %v1024 = vunpack.c.h.b16 %v705
        %v1025 = vunpack.c.l.b16 %v706
        %v1026 = vunpack.c.h.b16 %v706
        %v1027 = vunpack.c.l.b16 %v707
        %v1028 = vunpack.c.h.b16 %v707
        %v1029 = vunpack.c.l.b16 %v708
        %v1030 = vunpack.c.h.b16 %v708
        %v1031 = vpack.c.b16 %v835, %v831
        %v1032 = vpack.c.b16 %v836, %v832
        %v1033 = vpack.c.b16 %v837, %v833
        %v1034 = vpack.c.b16 %v838, %v834
        %v1035 = vpack.c.b16 %v843, %v839
        %v1036 = vpack.c.b16 %v844, %v840
        %v1037 = vpack.c.b16 %v845, %v841
        %v1038 = vpack.c.b16 %v846, %v842
        %v1039 = vpack.c.b16 %v851, %v847
        %v1040 = vpack.c.b16 %v852, %v848
        %v1041 = vpack.c.b16 %v853, %v849
        %v1042 = vpack.c.b16 %v854, %v850
        %v1043 = vpack.c.b16 %v859, %v855
        %v1044 = vpack.c.b16 %v860, %v856
        %v1045 = vpack.c.b16 %v861, %v857
        %v1046 = vpack.c.b16 %v862, %v858
        %v1047 = vpack.c.b16 %v867, %v863
        %v1048 = vpack.c.b16 %v868, %v864
        %v1049 = vpack.c.b16 %v869, %v865
        %v1050 = vpack.c.b16 %v870, %v866
        %v1051 = vpack.c.b16 %v875, %v871
        %v1052 = vpack.c.b16 %v876, %v872
        %v1053 = vpack.c.b16 %v877, %v873
        %v1054 = vpack.c.b16 %v878, %v874
        %v1055 = vpack.c.b16 %v883, %v879
        %v1056 = vpack.c.b16 %v884, %v880
        %v1057 = vpack.c.b16 %v885, %v881
        %v1058 = vpack.c.b16 %v886, %v882
        %v1059 = vpack.c.b16 %v891, %v887
        %v1060 = vpack.c.b16 %v892, %v888
        %v1061 = vpack.c.b16 %v893, %v889
        %v1062 = vpack.c.b16 %v894, %v890
        %v1063 = vpack.c.b16 %v899, %v895
        %v1064 = vpack.c.b16 %v900, %v896
        %v1065 = vpack.c.b16 %v901, %v897
        %v1066 = vpack.c.b16 %v902, %v898
        %v1067 = vpack.c.b16 %v907, %v903
        %v1068 = vpack.c.b16 %v908, %v904
        %v1069 = vpack.c.b16 %v909, %v905
        %v1070 = vpack.c.b16 %v910, %v906
        %v1071 = vpack.c.b16 %v915, %v911
        %v1072 = vpack.c.b16 %v916, %v912
        %v1073 = vpack.c.b16 %v917, %v913
        %v1074 = vpack.c.b16 %v918, %v914
        %v1075 = vpack.c.b16 %v923, %v919
        %v1076 = vpack.c.b16 %v924, %v920
        %v1077 = vpack.c.b16 %v925, %v921
        %v1078 = vpack.c.b16 %v926, %v922
        %v1079 = vpack.c.b16 %v931, %v927
        %v1080 = vpack.c.b16 %v932, %v928
        %v1081 = vpack.c.b16 %v933, %v929
        %v1082 = vpack.c.b16 %v934, %v930
        %v1083 = vpack.c.b16 %v939, %v935
        %v1084 = vpack.c.b16 %v940, %v936
        %v1085 = vpack.c.b16 %v941, %v937
        %v1086 = vpack.c.b16 %v942, %v938
        %v1087 = vpack.c.b16 %v947, %v943
        %v1088 = vpack.c.b16 %v948, %v944
        %v1089 = vpack.c.b16 %v949, %v945
        %v1090 = vpack.c.b16 %v950, %v946
        %v1091 = vpack.c.b16 %v955, %v951
        %v1092 = vpack.c.b16 %v956, %v952
        %v1093 = vpack.c.b16 %v957, %v953
        %v1094 = vpack.c.b16 %v958, %v954
        %v1095 = vpack.c.b16 %v963, %v959
        %v1096 = vpack.c.b16 %v964, %v960
        %v1097 = vpack.c.b16 %v965, %v961
        %v1098 = vpack.c.b16 %v966, %v962
        %v1099 = vpack.c.b16 %v971, %v967
        %v1100 = vpack.c.b16 %v972, %v968
        %v1101 = vpack.c.b16 %v973, %v969
        %v1102 = vpack.c.b16 %v974, %v970
        %v1103 = vpack.c.b16 %v979, %v975
        %v1104 = vpack.c.b16 %v980, %v976
        %v1105 = vpack.c.b16 %v981, %v977
        %v1106 = vpack.c.b16 %v982, %v978
        %v1107 = vpack.c.b16 %v987, %v983
        %v1108 = vpack.c.b16 %v988, %v984
        %v1109 = vpack.c.b16 %v989, %v985
        %v1110 = vpack.c.b16 %v990, %v986
        %v1111 = vpack.c.b16 %v995, %v991
        %v1112 = vpack.c.b16 %v996, %v992
        %v1113 = vpack.c.b16 %v997, %v993
        %v1114 = vpack.c.b16 %v998, %v994
        %v1115 = vpack.c.b16 %v1003, %v999
        %v1116 = vpack.c.b16 %v1004, %v1000
        %v1117 = vpack.c.b16 %v1005, %v1001
        %v1118 = vpack.c.b16 %v1006, %v1002
        %v1119 = vpack.c.b16 %v1011, %v1007
        %v1120 = vpack.c.b16 %v1012, %v1008
        %v1121 = vpack.c.b16 %v1013, %v1009
        %v1122 = vpack.c.b16 %v1014, %v1010
        %v1123 = vpack.c.b16 %v1019, %v1015
        %v1124 = vpack.c.b16 %v1020, %v1016
        %v1125 = vpack.c.b16 %v1021, %v1017
        %v1126 = vpack.c.b16 %v1022, %v1018
        %v1127 = vpack.c.b16 %v1027, %v1023
        %v1128 = vpack.c.b16 %v1028, %v1024
        %v1129 = vpack.c.b16 %v1029, %v1025
        %v1130 = vpack.c.b16 %v1030, %v1026
        %vm1231 = vcmask 130048
        %v1233 = vsel %vm1231, %v608, 0
        %1235 = vmatprep.subr.bf16.mxu0 %v1032
        %1236 = vmatpush1.bf16.msra.mxu0 %v1031
        %1237 = vmatprep.subr.bf16.mxu0 %v1036
        %1238 = vmatpush1.bf16.msra.mxu0 %v1035
        %1239 = vmatprep.subr.bf16.mxu0 %v1040
        %1240 = vmatpush1.bf16.msra.mxu0 %v1039
        %1241 = vmatprep.subr.bf16.mxu0 %v1044
        %1242 = vmatpush1.bf16.msra.mxu0 %v1043
        %1243 = vmatprep.subr.bf16.mxu0 %v1048
        %1244 = vmatpush1.bf16.msra.mxu0 %v1047
        %1245 = vmatprep.subr.bf16.mxu0 %v1052
        %1246 = vmatpush1.bf16.msra.mxu0 %v1051
        %1247 = vmatprep.subr.bf16.mxu0 %v1056
        %1248 = vmatpush1.bf16.msra.mxu0 %v1055
        %1249 = vmatprep.subr.bf16.mxu0 %v1060
        %1250 = vmatpush1.bf16.msra.mxu0 %v1059
        %1251 = vmatprep.subr.bf16.mxu0 %v1064
        %1252 = vmatpush1.bf16.msra.mxu0 %v1063
        %1253 = vmatprep.subr.bf16.mxu0 %v1068
        %1254 = vmatpush1.bf16.msra.mxu0 %v1067
        %1255 = vmatprep.subr.bf16.mxu0 %v1072
        %1256 = vmatpush1.bf16.msra.mxu0 %v1071
        %1257 = vmatprep.subr.bf16.mxu0 %v1076
        %1258 = vmatpush1.bf16.msra.mxu0 %v1075
        %1259 = vmatprep.subr.bf16.mxu0 %v1080
        %1260 = vmatpush1.bf16.msra.mxu0 %v1079
        %1261 = vmatprep.subr.bf16.mxu0 %v1084
        %1262 = vmatpush1.bf16.msra.mxu0 %v1083
        %1263 = vmatprep.subr.bf16.mxu0 %v1088
        %1264 = vmatpush1.bf16.msra.mxu0 %v1087
        %1265 = vmatprep.subr.bf16.mxu0 %v1092
        %1266 = vmatpush1.bf16.msra.mxu0 %v1091
        %1267 = vmatprep.mubr.bf16.mxu0 %v606
        %1268 = vmatmul.mubr.bf16.gmra.mrb[0].mxu0 %v605
        %v1269 = vpop.f32.mrb[0].mxu0
        %v1270 = vadd.f32 %v714, %v1269
        %v1271 = vpop.f32.mrb[0].mxu0
        %v1272 = vadd.f32 %v718, %v1271
        %v1273 = vpop.f32.mrb[0].mxu0
        %v1274 = vpop.f32.mrb[0].mxu0
        %1275 = vdwg.mxu0
        %1276 = vmatprep.subr.bf16.mxu0 %v1096
        %1277 = vmatpush1.bf16.msra.mxu0 %v1095
        %1278 = vmatprep.subr.bf16.mxu0 %v1100
        %1279 = vmatpush1.bf16.msra.mxu0 %v1099
        %1280 = vmatprep.subr.bf16.mxu0 %v1104
        %1281 = vmatpush1.bf16.msra.mxu0 %v1103
        %1282 = vmatprep.subr.bf16.mxu0 %v1108
        %1283 = vmatpush1.bf16.msra.mxu0 %v1107
        %1284 = vmatprep.subr.bf16.mxu0 %v1112
        %1285 = vmatpush1.bf16.msra.mxu0 %v1111
        %1286 = vmatprep.subr.bf16.mxu0 %v1116
        %1287 = vmatpush1.bf16.msra.mxu0 %v1115
        %1288 = vmatprep.subr.bf16.mxu0 %v1120
        %1289 = vmatpush1.bf16.msra.mxu0 %v1119
        %1290 = vmatprep.subr.bf16.mxu0 %v1124
        %1291 = vmatpush1.bf16.msra.mxu0 %v1123
        %1292 = vmatprep.subr.bf16.mxu0 %v1128
        %1293 = vmatpush1.bf16.msra.mxu0 %v1127
        %1294 = vmatprep.subr.bf16.mxu0 0
        %1295 = vmatpush1.bf16.msra.mxu0 0
        %1296 = vmatprep.subr.bf16.mxu0 0
        %1297 = vmatpush1.bf16.msra.mxu0 0
        %1298 = vmatprep.subr.bf16.mxu0 0
        %1299 = vmatpush1.bf16.msra.mxu0 0
        %1300 = vmatprep.subr.bf16.mxu0 0
        %1301 = vmatpush1.bf16.msra.mxu0 0
        %1302 = vmatprep.subr.bf16.mxu0 0
        %1303 = vmatpush1.bf16.msra.mxu0 0
        %1304 = vmatprep.subr.bf16.mxu0 0
        %1305 = vmatpush1.bf16.msra.mxu0 0
        %1306 = vmatprep.subr.bf16.mxu0 0
        %1307 = vmatpush1.bf16.msra.mxu0 0
        %1308 = vmatprep.mubr.bf16.mxu0 %v1233
        %1309 = vmatmul.mubr.bf16.gmra.mrb[0].mxu0 %v607
        %v1310 = vpop.f32.mrb[0].mxu0
        %v1311 = vadd.f32 %v1270, %v1310
        %v1312 = vpop.f32.mrb[0].mxu0
        %v1313 = vadd.f32 %v1272, %v1312
        %v1314 = vpop.f32.mrb[0].mxu0
        %v1315 = vpop.f32.mrb[0].mxu0
        %1316 = vdwg.mxu0
        %1317 = vmatprep.subr.bf16.mxu0 %v1034
        %1318 = vmatpush1.bf16.msra.mxu0 %v1033
        %1319 = vmatprep.subr.bf16.mxu0 %v1038
        %1320 = vmatpush1.bf16.msra.mxu0 %v1037
        %1321 = vmatprep.subr.bf16.mxu0 %v1042
        %1322 = vmatpush1.bf16.msra.mxu0 %v1041
        %1323 = vmatprep.subr.bf16.mxu0 %v1046
        %1324 = vmatpush1.bf16.msra.mxu0 %v1045
        %1325 = vmatprep.subr.bf16.mxu0 %v1050
        %1326 = vmatpush1.bf16.msra.mxu0 %v1049
        %1327 = vmatprep.subr.bf16.mxu0 %v1054
        %1328 = vmatpush1.bf16.msra.mxu0 %v1053
        %1329 = vmatprep.subr.bf16.mxu0 %v1058
        %1330 = vmatpush1.bf16.msra.mxu0 %v1057
        %1331 = vmatprep.subr.bf16.mxu0 %v1062
        %1332 = vmatpush1.bf16.msra.mxu0 %v1061
        %1333 = vmatprep.subr.bf16.mxu0 %v1066
        %1334 = vmatpush1.bf16.msra.mxu0 %v1065
        %1335 = vmatprep.subr.bf16.mxu0 %v1070
        %1336 = vmatpush1.bf16.msra.mxu0 %v1069
        %1337 = vmatprep.subr.bf16.mxu0 %v1074
        %1338 = vmatpush1.bf16.msra.mxu0 %v1073
        %1339 = vmatprep.subr.bf16.mxu0 %v1078
        %1340 = vmatpush1.bf16.msra.mxu0 %v1077
        %1341 = vmatprep.subr.bf16.mxu0 %v1082
        %1342 = vmatpush1.bf16.msra.mxu0 %v1081
        %1343 = vmatprep.subr.bf16.mxu0 %v1086
        %1344 = vmatpush1.bf16.msra.mxu0 %v1085
        %1345 = vmatprep.subr.bf16.mxu0 %v1090
        %1346 = vmatpush1.bf16.msra.mxu0 %v1089
        %1347 = vmatprep.subr.bf16.mxu0 %v1094
        %1348 = vmatpush1.bf16.msra.mxu0 %v1093
        %1349 = vmatprep.mubr.bf16.mxu0 %v606
        %1350 = vmatmul.mubr.bf16.gmra.mrb[0].mxu0 %v605
        %v1351 = vpop.f32.mrb[0].mxu0
        %v1352 = vadd.f32 %v722, %v1351
        %v1353 = vpop.f32.mrb[0].mxu0
        %v1354 = vadd.f32 %v726, %v1353
        %v1355 = vpop.f32.mrb[0].mxu0
        %v1356 = vpop.f32.mrb[0].mxu0
        %1357 = vdwg.mxu0
        %1358 = vmatprep.subr.bf16.mxu0 %v1098
        %1359 = vmatpush1.bf16.msra.mxu0 %v1097
        %1360 = vmatprep.subr.bf16.mxu0 %v1102
        %1361 = vmatpush1.bf16.msra.mxu0 %v1101
        %1362 = vmatprep.subr.bf16.mxu0 %v1106
        %1363 = vmatpush1.bf16.msra.mxu0 %v1105
        %1364 = vmatprep.subr.bf16.mxu0 %v1110
        %1365 = vmatpush1.bf16.msra.mxu0 %v1109
        %1366 = vmatprep.subr.bf16.mxu0 %v1114
        %1367 = vmatpush1.bf16.msra.mxu0 %v1113
        %1368 = vmatprep.subr.bf16.mxu0 %v1118
        %1369 = vmatpush1.bf16.msra.mxu0 %v1117
        %1370 = vmatprep.subr.bf16.mxu0 %v1122
        %1371 = vmatpush1.bf16.msra.mxu0 %v1121
        %1372 = vmatprep.subr.bf16.mxu0 %v1126
        %1373 = vmatpush1.bf16.msra.mxu0 %v1125
        %1374 = vmatprep.subr.bf16.mxu0 %v1130
        %1375 = vmatpush1.bf16.msra.mxu0 %v1129
        %1376 = vmatprep.subr.bf16.mxu0 0
        %1377 = vmatpush1.bf16.msra.mxu0 0
        %1378 = vmatprep.subr.bf16.mxu0 0
        %1379 = vmatpush1.bf16.msra.mxu0 0
        %1380 = vmatprep.subr.bf16.mxu0 0
        %1381 = vmatpush1.bf16.msra.mxu0 0
        %1382 = vmatprep.subr.bf16.mxu0 0
        %1383 = vmatpush1.bf16.msra.mxu0 0
        %1384 = vmatprep.subr.bf16.mxu0 0
        %1385 = vmatpush1.bf16.msra.mxu0 0
        %1386 = vmatprep.subr.bf16.mxu0 0
        %1387 = vmatpush1.bf16.msra.mxu0 0
        %1388 = vmatprep.subr.bf16.mxu0 0
        %1389 = vmatpush1.bf16.msra.mxu0 0
        %1390 = vmatprep.mubr.bf16.mxu0 %v1233
        %1391 = vmatmul.mubr.bf16.gmra.mrb[0].mxu0 %v607
        %v1392 = vpop.f32.mrb[0].mxu0
        %v1393 = vadd.f32 %v1352, %v1392
        %v1394 = vpop.f32.mrb[0].mxu0
        %v1395 = vadd.f32 %v1354, %v1394
        %v1396 = vpop.f32.mrb[0].mxu0
        %v1397 = vpop.f32.mrb[0].mxu0
        %1398 = vdwg.mxu0
        %v1399 = vmax.f32 %v1311, 0.0
        %v1400 = vmax.f32 %v1313, 0.0
        %v1401 = vmax.f32 %v1393, 0.0
        %v1402 = vmax.f32 %v1395, 0.0
        %v1403 = vpack.c.bf16 %v1399, %v1399
        %v1404 = vpack.c.bf16 %v1400, %v1400
        %v1405 = vpack.c.bf16 %v1401, %v1401
        %v1406 = vpack.c.bf16 %v1402, %v1402
        %v1407 = vld [vmem:[#allocation8] sm:$0xff]
        %v1408 = vld [vmem:[#allocation8 + $0x8] sm:$0xff]
        %v1409 = vld [vmem:[#allocation8 + $0x10] sm:$0xff]
        %v1410 = vld [vmem:[#allocation8 + $0x18] sm:$0xff]
        %v1411 = vld [vmem:[#allocation8 + $0x20] sm:$0xff]
        %v1412 = vld [vmem:[#allocation8 + $0x28] sm:$0xff]
        %v1413 = vld [vmem:[#allocation8 + $0x30] sm:$0xff]
        %v1414 = vld [vmem:[#allocation8 + $0x38] sm:$0xff]
        %v1415 = vld [vmem:[#allocation8 + $0x40] sm:$0xff]
        %v1416 = vld [vmem:[#allocation8 + $0x48] sm:$0xff]
        %v1417 = vld [vmem:[#allocation8 + $0x50] sm:$0xff]
        %v1418 = vld [vmem:[#allocation8 + $0x58] sm:$0xff]
        %v1419 = vld [vmem:[#allocation8 + $0x60] sm:$0xff]
        %v1420 = vld [vmem:[#allocation8 + $0x68] sm:$0xff]
        %v1421 = vld [vmem:[#allocation8 + $0x70] sm:$0xff]
        %v1422 = vld [vmem:[#allocation8 + $0x78] sm:$0xff]
        %v1423 = vld [vmem:[#allocation8 + $0x80] sm:$0xff]
        %v1424 = vld [vmem:[#allocation8 + $0x88] sm:$0xff]
        %v1425 = vld [vmem:[#allocation8 + $0x90] sm:$0xff]
        %v1426 = vld [vmem:[#allocation8 + $0x98] sm:$0xff]
        %v1427 = vld [vmem:[#allocation8 + $0xa0] sm:$0xff]
        %v1428 = vld [vmem:[#allocation8 + $0xa8] sm:$0xff]
        %v1429 = vld [vmem:[#allocation8 + $0xb0] sm:$0xff]
        %v1430 = vld [vmem:[#allocation8 + $0xb8] sm:$0xff]
        %v1431 = vld [vmem:[#allocation8 + $0xc0] sm:$0xff]
        %v1432 = vld [vmem:[#allocation8 + $0xc8] sm:$0xff]
        %v1433 = vld [vmem:[#allocation8 + $0xd0] sm:$0xff]
        %v1434 = vld [vmem:[#allocation8 + $0xd8] sm:$0xff]
        %v1435 = vld [vmem:[#allocation8 + $0xe0] sm:$0xff]
        %v1436 = vld [vmem:[#allocation8 + $0xe8] sm:$0xff]
        %v1437 = vld [vmem:[#allocation8 + $0xf0] sm:$0xff]
        %v1438 = vld [vmem:[#allocation8 + $0xf8] sm:$0xff]
        %v1439 = vld [vmem:[#allocation8 + $0x100] sm:$0xff]
        %v1440 = vld [vmem:[#allocation8 + $0x108] sm:$0xff]
        %v1441 = vld [vmem:[#allocation8 + $0x110] sm:$0xff]
        %v1442 = vld [vmem:[#allocation8 + $0x118] sm:$0xff]
        %v1443 = vld [vmem:[#allocation8 + $0x120] sm:$0xff]
        %v1444 = vld [vmem:[#allocation8 + $0x128] sm:$0xff]
        %v1445 = vld [vmem:[#allocation8 + $0x130] sm:$0xff]
        %v1446 = vld [vmem:[#allocation8 + $0x138] sm:$0xff]
        %v1447 = vld [vmem:[#allocation8 + $0x140] sm:$0xff]
        %v1448 = vld [vmem:[#allocation8 + $0x148] sm:$0xff]
        %v1449 = vld [vmem:[#allocation8 + $0x150] sm:$0xff]
        %v1450 = vld [vmem:[#allocation8 + $0x158] sm:$0xff]
        %v1451 = vld [vmem:[#allocation8 + $0x160] sm:$0xff]
        %v1452 = vld [vmem:[#allocation8 + $0x168] sm:$0xff]
        %v1453 = vld [vmem:[#allocation8 + $0x170] sm:$0xff]
        %v1454 = vld [vmem:[#allocation8 + $0x178] sm:$0xff]
        %v1455 = vld [vmem:[#allocation8 + $0x180] sm:$0xff]
        %v1456 = vld [vmem:[#allocation8 + $0x188] sm:$0xff]
        %v1457 = vld [vmem:[#allocation8 + $0x190] sm:$0xff]
        %v1458 = vld [vmem:[#allocation8 + $0x198] sm:$0xff]
        %v1459 = vld [vmem:[#allocation8 + $0x1a0] sm:$0xff]
        %v1460 = vld [vmem:[#allocation8 + $0x1a8] sm:$0xff]
        %v1461 = vld [vmem:[#allocation8 + $0x1b0] sm:$0xff]
        %v1462 = vld [vmem:[#allocation8 + $0x1b8] sm:$0xff]
        %v1463 = vld [vmem:[#allocation8 + $0x1c0] sm:$0xff]
        %v1464 = vld [vmem:[#allocation8 + $0x1c8] sm:$0xff]
        %v1465 = vld [vmem:[#allocation8 + $0x1d0] sm:$0xff]
        %v1466 = vld [vmem:[#allocation8 + $0x1d8] sm:$0xff]
        %v1467 = vld [vmem:[#allocation8 + $0x1e0] sm:$0xff]
        %v1468 = vld [vmem:[#allocation8 + $0x1e8] sm:$0xff]
        %v1469 = vld [vmem:[#allocation8 + $0x1f0] sm:$0xff]
        %v1470 = vld [vmem:[#allocation8 + $0x1f8] sm:$0xff]
        %v1471 = vld [vmem:[#allocation8 + $0x200] sm:$0xff]
        %v1472 = vld [vmem:[#allocation8 + $0x208] sm:$0xff]
        %v1473 = vld [vmem:[#allocation8 + $0x210] sm:$0xff]
        %v1474 = vld [vmem:[#allocation8 + $0x218] sm:$0xff]
        %v1475 = vld [vmem:[#allocation8 + $0x220] sm:$0xff]
        %v1476 = vld [vmem:[#allocation8 + $0x228] sm:$0xff]
        %v1477 = vld [vmem:[#allocation8 + $0x230] sm:$0xff]
        %v1478 = vld [vmem:[#allocation8 + $0x238] sm:$0xff]
        %v1479 = vld [vmem:[#allocation8 + $0x240] sm:$0xff]
        %v1480 = vld [vmem:[#allocation8 + $0x248] sm:$0xff]
        %v1481 = vld [vmem:[#allocation8 + $0x250] sm:$0xff]
        %v1482 = vld [vmem:[#allocation8 + $0x258] sm:$0xff]
        %v1483 = vld [vmem:[#allocation8 + $0x260] sm:$0xff]
        %v1484 = vld [vmem:[#allocation8 + $0x268] sm:$0xff]
        %v1485 = vld [vmem:[#allocation8 + $0x270] sm:$0xff]
        %v1486 = vld [vmem:[#allocation8 + $0x278] sm:$0xff]
        %v1487 = vld [vmem:[#allocation8 + $0x280] sm:$0xff]
        %v1488 = vld [vmem:[#allocation8 + $0x288] sm:$0xff]
        %v1489 = vld [vmem:[#allocation8 + $0x290] sm:$0xff]
        %v1490 = vld [vmem:[#allocation8 + $0x298] sm:$0xff]
        %v1491 = vld [vmem:[#allocation8 + $0x2a0] sm:$0xff]
        %v1492 = vld [vmem:[#allocation8 + $0x2a8] sm:$0xff]
        %v1493 = vld [vmem:[#allocation8 + $0x2b0] sm:$0xff]
        %v1494 = vld [vmem:[#allocation8 + $0x2b8] sm:$0xff]
        %v1495 = vld [vmem:[#allocation8 + $0x2c0] sm:$0xff]
        %v1496 = vld [vmem:[#allocation8 + $0x2c8] sm:$0xff]
        %v1497 = vld [vmem:[#allocation8 + $0x2d0] sm:$0xff]
        %v1498 = vld [vmem:[#allocation8 + $0x2d8] sm:$0xff]
        %v1499 = vld [vmem:[#allocation8 + $0x2e0] sm:$0xff]
        %v1500 = vld [vmem:[#allocation8 + $0x2e8] sm:$0xff]
        %v1501 = vld [vmem:[#allocation8 + $0x2f0] sm:$0xff]
        %v1502 = vld [vmem:[#allocation8 + $0x2f8] sm:$0xff]
        %v1503 = vld [vmem:[#allocation8 + $0x300] sm:$0xff]
        %v1504 = vld [vmem:[#allocation8 + $0x308] sm:$0xff]
        %v1505 = vld [vmem:[#allocation8 + $0x310] sm:$0xff]
        %v1506 = vld [vmem:[#allocation8 + $0x318] sm:$0xff]
        %v1507 = vld [vmem:[%s6] sm:$0xf]
        %v1509 = vlaneseq
        %v1510 = vshrl.u32 %v1509, 7
        %v1511 = vsub.s32 0, %v1510
        %v1512 = vrot.slane %v1507, %v1511
        %v1513 = vlaneseq
        %v1514 = vshrl.u32 %v1513, 7
        %v1515 = vsub.s32 1, %v1514
        %v1516 = vrot.slane %v1507, %v1515
        %v1517 = vlaneseq
        %v1518 = vshrl.u32 %v1517, 7
        %v1519 = vsub.s32 2, %v1518
        %v1520 = vrot.slane %v1507, %v1519
        %v1521 = vlaneseq
        %v1522 = vshrl.u32 %v1521, 7
        %v1523 = vsub.s32 3, %v1522
        %v1524 = vrot.slane %v1507, %v1523
        %v1629 = vunpack.c.l.b16 %v1407
        %v1630 = vunpack.c.h.b16 %v1407
        %v1631 = vunpack.c.l.b16 %v1408
        %v1632 = vunpack.c.h.b16 %v1408
        %v1633 = vunpack.c.l.b16 %v1409
        %v1634 = vunpack.c.h.b16 %v1409
        %v1635 = vunpack.c.l.b16 %v1410
        %v1636 = vunpack.c.h.b16 %v1410
        %v1637 = vunpack.c.l.b16 %v1411
        %v1638 = vunpack.c.h.b16 %v1411
        %v1639 = vunpack.c.l.b16 %v1412
        %v1640 = vunpack.c.h.b16 %v1412
        %v1641 = vunpack.c.l.b16 %v1413
        %v1642 = vunpack.c.h.b16 %v1413
        %v1643 = vunpack.c.l.b16 %v1414
        %v1644 = vunpack.c.h.b16 %v1414
        %v1645 = vunpack.c.l.b16 %v1415
        %v1646 = vunpack.c.h.b16 %v1415
        %v1647 = vunpack.c.l.b16 %v1416
        %v1648 = vunpack.c.h.b16 %v1416
        %v1649 = vunpack.c.l.b16 %v1417
        %v1650 = vunpack.c.h.b16 %v1417
        %v1651 = vunpack.c.l.b16 %v1418
        %v1652 = vunpack.c.h.b16 %v1418
        %v1653 = vunpack.c.l.b16 %v1419
        %v1654 = vunpack.c.h.b16 %v1419
        %v1655 = vunpack.c.l.b16 %v1420
        %v1656 = vunpack.c.h.b16 %v1420
        %v1657 = vunpack.c.l.b16 %v1421
        %v1658 = vunpack.c.h.b16 %v1421
        %v1659 = vunpack.c.l.b16 %v1422
        %v1660 = vunpack.c.h.b16 %v1422
        %v1661 = vunpack.c.l.b16 %v1423
        %v1662 = vunpack.c.h.b16 %v1423
        %v1663 = vunpack.c.l.b16 %v1424
        %v1664 = vunpack.c.h.b16 %v1424
        %v1665 = vunpack.c.l.b16 %v1425
        %v1666 = vunpack.c.h.b16 %v1425
        %v1667 = vunpack.c.l.b16 %v1426
        %v1668 = vunpack.c.h.b16 %v1426
        %v1669 = vunpack.c.l.b16 %v1427
        %v1670 = vunpack.c.h.b16 %v1427
        %v1671 = vunpack.c.l.b16 %v1428
        %v1672 = vunpack.c.h.b16 %v1428
        %v1673 = vunpack.c.l.b16 %v1429
        %v1674 = vunpack.c.h.b16 %v1429
        %v1675 = vunpack.c.l.b16 %v1430
        %v1676 = vunpack.c.h.b16 %v1430
        %v1677 = vunpack.c.l.b16 %v1431
        %v1678 = vunpack.c.h.b16 %v1431
        %v1679 = vunpack.c.l.b16 %v1432
        %v1680 = vunpack.c.h.b16 %v1432
        %v1681 = vunpack.c.l.b16 %v1433
        %v1682 = vunpack.c.h.b16 %v1433
        %v1683 = vunpack.c.l.b16 %v1434
        %v1684 = vunpack.c.h.b16 %v1434
        %v1685 = vunpack.c.l.b16 %v1435
        %v1686 = vunpack.c.h.b16 %v1435
        %v1687 = vunpack.c.l.b16 %v1436
        %v1688 = vunpack.c.h.b16 %v1436
        %v1689 = vunpack.c.l.b16 %v1437
        %v1690 = vunpack.c.h.b16 %v1437
        %v1691 = vunpack.c.l.b16 %v1438
        %v1692 = vunpack.c.h.b16 %v1438
        %v1693 = vunpack.c.l.b16 %v1439
        %v1694 = vunpack.c.h.b16 %v1439
        %v1695 = vunpack.c.l.b16 %v1440
        %v1696 = vunpack.c.h.b16 %v1440
        %v1697 = vunpack.c.l.b16 %v1441
        %v1698 = vunpack.c.h.b16 %v1441
        %v1699 = vunpack.c.l.b16 %v1442
        %v1700 = vunpack.c.h.b16 %v1442
        %v1701 = vunpack.c.l.b16 %v1443
        %v1702 = vunpack.c.h.b16 %v1443
        %v1703 = vunpack.c.l.b16 %v1444
        %v1704 = vunpack.c.h.b16 %v1444
        %v1705 = vunpack.c.l.b16 %v1445
        %v1706 = vunpack.c.h.b16 %v1445
        %v1707 = vunpack.c.l.b16 %v1446
        %v1708 = vunpack.c.h.b16 %v1446
        %v1709 = vunpack.c.l.b16 %v1447
        %v1710 = vunpack.c.h.b16 %v1447
        %v1711 = vunpack.c.l.b16 %v1448
        %v1712 = vunpack.c.h.b16 %v1448
        %v1713 = vunpack.c.l.b16 %v1449
        %v1714 = vunpack.c.h.b16 %v1449
        %v1715 = vunpack.c.l.b16 %v1450
        %v1716 = vunpack.c.h.b16 %v1450
        %v1717 = vunpack.c.l.b16 %v1451
        %v1718 = vunpack.c.h.b16 %v1451
        %v1719 = vunpack.c.l.b16 %v1452
        %v1720 = vunpack.c.h.b16 %v1452
        %v1721 = vunpack.c.l.b16 %v1453
        %v1722 = vunpack.c.h.b16 %v1453
        %v1723 = vunpack.c.l.b16 %v1454
        %v1724 = vunpack.c.h.b16 %v1454
        %v1725 = vunpack.c.l.b16 %v1455
        %v1726 = vunpack.c.h.b16 %v1455
        %v1727 = vunpack.c.l.b16 %v1456
        %v1728 = vunpack.c.h.b16 %v1456
        %v1729 = vunpack.c.l.b16 %v1457
        %v1730 = vunpack.c.h.b16 %v1457
        %v1731 = vunpack.c.l.b16 %v1458
        %v1732 = vunpack.c.h.b16 %v1458
        %v1733 = vunpack.c.l.b16 %v1459
        %v1734 = vunpack.c.h.b16 %v1459
        %v1735 = vunpack.c.l.b16 %v1460
        %v1736 = vunpack.c.h.b16 %v1460
        %v1737 = vunpack.c.l.b16 %v1461
        %v1738 = vunpack.c.h.b16 %v1461
        %v1739 = vunpack.c.l.b16 %v1462
        %v1740 = vunpack.c.h.b16 %v1462
        %v1741 = vunpack.c.l.b16 %v1463
        %v1742 = vunpack.c.h.b16 %v1463
        %v1743 = vunpack.c.l.b16 %v1464
        %v1744 = vunpack.c.h.b16 %v1464
        %v1745 = vunpack.c.l.b16 %v1465
        %v1746 = vunpack.c.h.b16 %v1465
        %v1747 = vunpack.c.l.b16 %v1466
        %v1748 = vunpack.c.h.b16 %v1466
        %v1749 = vunpack.c.l.b16 %v1467
        %v1750 = vunpack.c.h.b16 %v1467
        %v1751 = vunpack.c.l.b16 %v1468
        %v1752 = vunpack.c.h.b16 %v1468
        %v1753 = vunpack.c.l.b16 %v1469
        %v1754 = vunpack.c.h.b16 %v1469
        %v1755 = vunpack.c.l.b16 %v1470
        %v1756 = vunpack.c.h.b16 %v1470
        %v1757 = vunpack.c.l.b16 %v1471
        %v1758 = vunpack.c.h.b16 %v1471
        %v1759 = vunpack.c.l.b16 %v1472
        %v1760 = vunpack.c.h.b16 %v1472
        %v1761 = vunpack.c.l.b16 %v1473
        %v1762 = vunpack.c.h.b16 %v1473
        %v1763 = vunpack.c.l.b16 %v1474
        %v1764 = vunpack.c.h.b16 %v1474
        %v1765 = vunpack.c.l.b16 %v1475
        %v1766 = vunpack.c.h.b16 %v1475
        %v1767 = vunpack.c.l.b16 %v1476
        %v1768 = vunpack.c.h.b16 %v1476
        %v1769 = vunpack.c.l.b16 %v1477
        %v1770 = vunpack.c.h.b16 %v1477
        %v1771 = vunpack.c.l.b16 %v1478
        %v1772 = vunpack.c.h.b16 %v1478
        %v1773 = vunpack.c.l.b16 %v1479
        %v1774 = vunpack.c.h.b16 %v1479
        %v1775 = vunpack.c.l.b16 %v1480
        %v1776 = vunpack.c.h.b16 %v1480
        %v1777 = vunpack.c.l.b16 %v1481
        %v1778 = vunpack.c.h.b16 %v1481
        %v1779 = vunpack.c.l.b16 %v1482
        %v1780 = vunpack.c.h.b16 %v1482
        %v1781 = vunpack.c.l.b16 %v1483
        %v1782 = vunpack.c.h.b16 %v1483
        %v1783 = vunpack.c.l.b16 %v1484
        %v1784 = vunpack.c.h.b16 %v1484
        %v1785 = vunpack.c.l.b16 %v1485
        %v1786 = vunpack.c.h.b16 %v1485
        %v1787 = vunpack.c.l.b16 %v1486
        %v1788 = vunpack.c.h.b16 %v1486
        %v1789 = vunpack.c.l.b16 %v1487
        %v1790 = vunpack.c.h.b16 %v1487
        %v1791 = vunpack.c.l.b16 %v1488
        %v1792 = vunpack.c.h.b16 %v1488
        %v1793 = vunpack.c.l.b16 %v1489
        %v1794 = vunpack.c.h.b16 %v1489
        %v1795 = vunpack.c.l.b16 %v1490
        %v1796 = vunpack.c.h.b16 %v1490
        %v1797 = vunpack.c.l.b16 %v1491
        %v1798 = vunpack.c.h.b16 %v1491
        %v1799 = vunpack.c.l.b16 %v1492
        %v1800 = vunpack.c.h.b16 %v1492
        %v1801 = vunpack.c.l.b16 %v1493
        %v1802 = vunpack.c.h.b16 %v1493
        %v1803 = vunpack.c.l.b16 %v1494
        %v1804 = vunpack.c.h.b16 %v1494
        %v1805 = vunpack.c.l.b16 %v1495
        %v1806 = vunpack.c.h.b16 %v1495
        %v1807 = vunpack.c.l.b16 %v1496
        %v1808 = vunpack.c.h.b16 %v1496
        %v1809 = vunpack.c.l.b16 %v1497
        %v1810 = vunpack.c.h.b16 %v1497
        %v1811 = vunpack.c.l.b16 %v1498
        %v1812 = vunpack.c.h.b16 %v1498
        %v1813 = vunpack.c.l.b16 %v1499
        %v1814 = vunpack.c.h.b16 %v1499
        %v1815 = vunpack.c.l.b16 %v1500
        %v1816 = vunpack.c.h.b16 %v1500
        %v1817 = vunpack.c.l.b16 %v1501
        %v1818 = vunpack.c.h.b16 %v1501
        %v1819 = vunpack.c.l.b16 %v1502
        %v1820 = vunpack.c.h.b16 %v1502
        %v1821 = vunpack.c.l.b16 %v1503
        %v1822 = vunpack.c.h.b16 %v1503
        %v1823 = vunpack.c.l.b16 %v1504
        %v1824 = vunpack.c.h.b16 %v1504
        %v1825 = vunpack.c.l.b16 %v1505
        %v1826 = vunpack.c.h.b16 %v1505
        %v1827 = vunpack.c.l.b16 %v1506
        %v1828 = vunpack.c.h.b16 %v1506
        %v1829 = vpack.c.b16 %v1633, %v1629
        %v1830 = vpack.c.b16 %v1634, %v1630
        %v1831 = vpack.c.b16 %v1635, %v1631
        %v1832 = vpack.c.b16 %v1636, %v1632
        %v1833 = vpack.c.b16 %v1641, %v1637
        %v1834 = vpack.c.b16 %v1642, %v1638
        %v1835 = vpack.c.b16 %v1643, %v1639
        %v1836 = vpack.c.b16 %v1644, %v1640
        %v1837 = vpack.c.b16 %v1649, %v1645
        %v1838 = vpack.c.b16 %v1650, %v1646
        %v1839 = vpack.c.b16 %v1651, %v1647
        %v1840 = vpack.c.b16 %v1652, %v1648
        %v1841 = vpack.c.b16 %v1657, %v1653
        %v1842 = vpack.c.b16 %v1658, %v1654
        %v1843 = vpack.c.b16 %v1659, %v1655
        %v1844 = vpack.c.b16 %v1660, %v1656
        %v1845 = vpack.c.b16 %v1665, %v1661
        %v1846 = vpack.c.b16 %v1666, %v1662
        %v1847 = vpack.c.b16 %v1667, %v1663
        %v1848 = vpack.c.b16 %v1668, %v1664
        %v1849 = vpack.c.b16 %v1673, %v1669
        %v1850 = vpack.c.b16 %v1674, %v1670
        %v1851 = vpack.c.b16 %v1675, %v1671
        %v1852 = vpack.c.b16 %v1676, %v1672
        %v1853 = vpack.c.b16 %v1681, %v1677
        %v1854 = vpack.c.b16 %v1682, %v1678
        %v1855 = vpack.c.b16 %v1683, %v1679
        %v1856 = vpack.c.b16 %v1684, %v1680
        %v1857 = vpack.c.b16 %v1689, %v1685
        %v1858 = vpack.c.b16 %v1690, %v1686
        %v1859 = vpack.c.b16 %v1691, %v1687
        %v1860 = vpack.c.b16 %v1692, %v1688
        %v1861 = vpack.c.b16 %v1697, %v1693
        %v1862 = vpack.c.b16 %v1698, %v1694
        %v1863 = vpack.c.b16 %v1699, %v1695
        %v1864 = vpack.c.b16 %v1700, %v1696
        %v1865 = vpack.c.b16 %v1705, %v1701
        %v1866 = vpack.c.b16 %v1706, %v1702
        %v1867 = vpack.c.b16 %v1707, %v1703
        %v1868 = vpack.c.b16 %v1708, %v1704
        %v1869 = vpack.c.b16 %v1713, %v1709
        %v1870 = vpack.c.b16 %v1714, %v1710
        %v1871 = vpack.c.b16 %v1715, %v1711
        %v1872 = vpack.c.b16 %v1716, %v1712
        %v1873 = vpack.c.b16 %v1721, %v1717
        %v1874 = vpack.c.b16 %v1722, %v1718
        %v1875 = vpack.c.b16 %v1723, %v1719
        %v1876 = vpack.c.b16 %v1724, %v1720
        %v1877 = vpack.c.b16 %v1729, %v1725
        %v1878 = vpack.c.b16 %v1730, %v1726
        %v1879 = vpack.c.b16 %v1731, %v1727
        %v1880 = vpack.c.b16 %v1732, %v1728
        %v1881 = vpack.c.b16 %v1737, %v1733
        %v1882 = vpack.c.b16 %v1738, %v1734
        %v1883 = vpack.c.b16 %v1739, %v1735
        %v1884 = vpack.c.b16 %v1740, %v1736
        %v1885 = vpack.c.b16 %v1745, %v1741
        %v1886 = vpack.c.b16 %v1746, %v1742
        %v1887 = vpack.c.b16 %v1747, %v1743
        %v1888 = vpack.c.b16 %v1748, %v1744
        %v1889 = vpack.c.b16 %v1753, %v1749
        %v1890 = vpack.c.b16 %v1754, %v1750
        %v1891 = vpack.c.b16 %v1755, %v1751
        %v1892 = vpack.c.b16 %v1756, %v1752
        %v1893 = vpack.c.b16 %v1761, %v1757
        %v1894 = vpack.c.b16 %v1762, %v1758
        %v1895 = vpack.c.b16 %v1763, %v1759
        %v1896 = vpack.c.b16 %v1764, %v1760
        %v1897 = vpack.c.b16 %v1769, %v1765
        %v1898 = vpack.c.b16 %v1770, %v1766
        %v1899 = vpack.c.b16 %v1771, %v1767
        %v1900 = vpack.c.b16 %v1772, %v1768
        %v1901 = vpack.c.b16 %v1777, %v1773
        %v1902 = vpack.c.b16 %v1778, %v1774
        %v1903 = vpack.c.b16 %v1779, %v1775
        %v1904 = vpack.c.b16 %v1780, %v1776
        %v1905 = vpack.c.b16 %v1785, %v1781
        %v1906 = vpack.c.b16 %v1786, %v1782
        %v1907 = vpack.c.b16 %v1787, %v1783
        %v1908 = vpack.c.b16 %v1788, %v1784
        %v1909 = vpack.c.b16 %v1793, %v1789
        %v1910 = vpack.c.b16 %v1794, %v1790
        %v1911 = vpack.c.b16 %v1795, %v1791
        %v1912 = vpack.c.b16 %v1796, %v1792
        %v1913 = vpack.c.b16 %v1801, %v1797
        %v1914 = vpack.c.b16 %v1802, %v1798
        %v1915 = vpack.c.b16 %v1803, %v1799
        %v1916 = vpack.c.b16 %v1804, %v1800
        %v1917 = vpack.c.b16 %v1809, %v1805
        %v1918 = vpack.c.b16 %v1810, %v1806
        %v1919 = vpack.c.b16 %v1811, %v1807
        %v1920 = vpack.c.b16 %v1812, %v1808
        %v1921 = vpack.c.b16 %v1817, %v1813
        %v1922 = vpack.c.b16 %v1818, %v1814
        %v1923 = vpack.c.b16 %v1819, %v1815
        %v1924 = vpack.c.b16 %v1820, %v1816
        %v1925 = vpack.c.b16 %v1825, %v1821
        %v1926 = vpack.c.b16 %v1826, %v1822
        %v1927 = vpack.c.b16 %v1827, %v1823
        %v1928 = vpack.c.b16 %v1828, %v1824
        %v2030 = vsel %vm1231, %v1406, 0
        %2032 = vmatprep.subr.bf16.mxu0 %v1830
        %2033 = vmatpush1.bf16.msra.mxu0 %v1829
        %2034 = vmatprep.subr.bf16.mxu0 %v1834
        %2035 = vmatpush1.bf16.msra.mxu0 %v1833
        %2036 = vmatprep.subr.bf16.mxu0 %v1838
        %2037 = vmatpush1.bf16.msra.mxu0 %v1837
        %2038 = vmatprep.subr.bf16.mxu0 %v1842
        %2039 = vmatpush1.bf16.msra.mxu0 %v1841
        %2040 = vmatprep.subr.bf16.mxu0 %v1846
        %2041 = vmatpush1.bf16.msra.mxu0 %v1845
        %2042 = vmatprep.subr.bf16.mxu0 %v1850
        %2043 = vmatpush1.bf16.msra.mxu0 %v1849
        %2044 = vmatprep.subr.bf16.mxu0 %v1854
        %2045 = vmatpush1.bf16.msra.mxu0 %v1853
        %2046 = vmatprep.subr.bf16.mxu0 %v1858
        %2047 = vmatpush1.bf16.msra.mxu0 %v1857
        %2048 = vmatprep.subr.bf16.mxu0 %v1862
        %2049 = vmatpush1.bf16.msra.mxu0 %v1861
        %2050 = vmatprep.subr.bf16.mxu0 %v1866
        %2051 = vmatpush1.bf16.msra.mxu0 %v1865
        %2052 = vmatprep.subr.bf16.mxu0 %v1870
        %2053 = vmatpush1.bf16.msra.mxu0 %v1869
        %2054 = vmatprep.subr.bf16.mxu0 %v1874
        %2055 = vmatpush1.bf16.msra.mxu0 %v1873
        %2056 = vmatprep.subr.bf16.mxu0 %v1878
        %2057 = vmatpush1.bf16.msra.mxu0 %v1877
        %2058 = vmatprep.subr.bf16.mxu0 %v1882
        %2059 = vmatpush1.bf16.msra.mxu0 %v1881
        %2060 = vmatprep.subr.bf16.mxu0 %v1886
        %2061 = vmatpush1.bf16.msra.mxu0 %v1885
        %2062 = vmatprep.subr.bf16.mxu0 %v1890
        %2063 = vmatpush1.bf16.msra.mxu0 %v1889
        %2064 = vmatprep.mubr.bf16.mxu0 %v1404
        %2065 = vmatmul.mubr.bf16.gmra.mrb[0].mxu0 %v1403
        %v2066 = vpop.f32.mrb[0].mxu0
        %v2067 = vadd.f32 %v1512, %v2066
        %v2068 = vpop.f32.mrb[0].mxu0
        %v2069 = vadd.f32 %v1516, %v2068
        %v2070 = vpop.f32.mrb[0].mxu0
        %v2071 = vpop.f32.mrb[0].mxu0
        %2072 = vdwg.mxu0
        %2073 = vmatprep.subr.bf16.mxu0 %v1894
        %2074 = vmatpush1.bf16.msra.mxu0 %v1893
        %2075 = vmatprep.subr.bf16.mxu0 %v1898
        %2076 = vmatpush1.bf16.msra.mxu0 %v1897
        %2077 = vmatprep.subr.bf16.mxu0 %v1902
        %2078 = vmatpush1.bf16.msra.mxu0 %v1901
        %2079 = vmatprep.subr.bf16.mxu0 %v1906
        %2080 = vmatpush1.bf16.msra.mxu0 %v1905
        %2081 = vmatprep.subr.bf16.mxu0 %v1910
        %2082 = vmatpush1.bf16.msra.mxu0 %v1909
        %2083 = vmatprep.subr.bf16.mxu0 %v1914
        %2084 = vmatpush1.bf16.msra.mxu0 %v1913
        %2085 = vmatprep.subr.bf16.mxu0 %v1918
        %2086 = vmatpush1.bf16.msra.mxu0 %v1917
        %2087 = vmatprep.subr.bf16.mxu0 %v1922
        %2088 = vmatpush1.bf16.msra.mxu0 %v1921
        %2089 = vmatprep.subr.bf16.mxu0 %v1926
        %2090 = vmatpush1.bf16.msra.mxu0 %v1925
        %2091 = vmatprep.subr.bf16.mxu0 0
        %2092 = vmatpush1.bf16.msra.mxu0 0
        %2093 = vmatprep.subr.bf16.mxu0 0
        %2094 = vmatpush1.bf16.msra.mxu0 0
        %2095 = vmatprep.subr.bf16.mxu0 0
        %2096 = vmatpush1.bf16.msra.mxu0 0
        %2097 = vmatprep.subr.bf16.mxu0 0
        %2098 = vmatpush1.bf16.msra.mxu0 0
        %2099 = vmatprep.subr.bf16.mxu0 0
        %2100 = vmatpush1.bf16.msra.mxu0 0
        %2101 = vmatprep.subr.bf16.mxu0 0
        %2102 = vmatpush1.bf16.msra.mxu0 0
        %2103 = vmatprep.subr.bf16.mxu0 0
        %2104 = vmatpush1.bf16.msra.mxu0 0
        %2105 = vmatprep.mubr.bf16.mxu0 %v2030
        %2106 = vmatmul.mubr.bf16.gmra.mrb[0].mxu0 %v1405
        %v2107 = vpop.f32.mrb[0].mxu0
        %v2108 = vadd.f32 %v2067, %v2107
        %v2109 = vpop.f32.mrb[0].mxu0
        %v2110 = vadd.f32 %v2069, %v2109
        %v2111 = vpop.f32.mrb[0].mxu0
        %v2112 = vpop.f32.mrb[0].mxu0
        %2113 = vdwg.mxu0
        %2114 = vmatprep.subr.bf16.mxu0 %v1832
        %2115 = vmatpush1.bf16.msra.mxu0 %v1831
        %2116 = vmatprep.subr.bf16.mxu0 %v1836
        %2117 = vmatpush1.bf16.msra.mxu0 %v1835
        %2118 = vmatprep.subr.bf16.mxu0 %v1840
        %2119 = vmatpush1.bf16.msra.mxu0 %v1839
        %2120 = vmatprep.subr.bf16.mxu0 %v1844
        %2121 = vmatpush1.bf16.msra.mxu0 %v1843
        %2122 = vmatprep.subr.bf16.mxu0 %v1848
        %2123 = vmatpush1.bf16.msra.mxu0 %v1847
        %2124 = vmatprep.subr.bf16.mxu0 %v1852
        %2125 = vmatpush1.bf16.msra.mxu0 %v1851
        %2126 = vmatprep.subr.bf16.mxu0 %v1856
        %2127 = vmatpush1.bf16.msra.mxu0 %v1855
        %2128 = vmatprep.subr.bf16.mxu0 %v1860
        %2129 = vmatpush1.bf16.msra.mxu0 %v1859
        %2130 = vmatprep.subr.bf16.mxu0 %v1864
        %2131 = vmatpush1.bf16.msra.mxu0 %v1863
        %2132 = vmatprep.subr.bf16.mxu0 %v1868
        %2133 = vmatpush1.bf16.msra.mxu0 %v1867
        %2134 = vmatprep.subr.bf16.mxu0 %v1872
        %2135 = vmatpush1.bf16.msra.mxu0 %v1871
        %2136 = vmatprep.subr.bf16.mxu0 %v1876
        %2137 = vmatpush1.bf16.msra.mxu0 %v1875
        %2138 = vmatprep.subr.bf16.mxu0 %v1880
        %2139 = vmatpush1.bf16.msra.mxu0 %v1879
        %2140 = vmatprep.subr.bf16.mxu0 %v1884
        %2141 = vmatpush1.bf16.msra.mxu0 %v1883
        %2142 = vmatprep.subr.bf16.mxu0 %v1888
        %2143 = vmatpush1.bf16.msra.mxu0 %v1887
        %2144 = vmatprep.subr.bf16.mxu0 %v1892
        %2145 = vmatpush1.bf16.msra.mxu0 %v1891
        %2146 = vmatprep.mubr.bf16.mxu0 %v1404
        %2147 = vmatmul.mubr.bf16.gmra.mrb[0].mxu0 %v1403
        %v2148 = vpop.f32.mrb[0].mxu0
        %v2149 = vadd.f32 %v1520, %v2148
        %v2150 = vpop.f32.mrb[0].mxu0
        %v2151 = vadd.f32 %v1524, %v2150
        %v2152 = vpop.f32.mrb[0].mxu0
        %v2153 = vpop.f32.mrb[0].mxu0
        %2154 = vdwg.mxu0
        %2155 = vmatprep.subr.bf16.mxu0 %v1896
        %2156 = vmatpush1.bf16.msra.mxu0 %v1895
        %2157 = vmatprep.subr.bf16.mxu0 %v1900
        %2158 = vmatpush1.bf16.msra.mxu0 %v1899
        %2159 = vmatprep.subr.bf16.mxu0 %v1904
        %2160 = vmatpush1.bf16.msra.mxu0 %v1903
        %2161 = vmatprep.subr.bf16.mxu0 %v1908
        %2162 = vmatpush1.bf16.msra.mxu0 %v1907
        %2163 = vmatprep.subr.bf16.mxu0 %v1912
        %2164 = vmatpush1.bf16.msra.mxu0 %v1911
        %2165 = vmatprep.subr.bf16.mxu0 %v1916
        %2166 = vmatpush1.bf16.msra.mxu0 %v1915
        %2167 = vmatprep.subr.bf16.mxu0 %v1920
        %2168 = vmatpush1.bf16.msra.mxu0 %v1919
        %2169 = vmatprep.subr.bf16.mxu0 %v1924
        %2170 = vmatpush1.bf16.msra.mxu0 %v1923
        %2171 = vmatprep.subr.bf16.mxu0 %v1928
        %2172 = vmatpush1.bf16.msra.mxu0 %v1927
        %2173 = vmatprep.subr.bf16.mxu0 0
        %2174 = vmatpush1.bf16.msra.mxu0 0
        %2175 = vmatprep.subr.bf16.mxu0 0
        %2176 = vmatpush1.bf16.msra.mxu0 0
        %2177 = vmatprep.subr.bf16.mxu0 0
        %2178 = vmatpush1.bf16.msra.mxu0 0
        %2179 = vmatprep.subr.bf16.mxu0 0
        %2180 = vmatpush1.bf16.msra.mxu0 0
        %2181 = vmatprep.subr.bf16.mxu0 0
        %2182 = vmatpush1.bf16.msra.mxu0 0
        %2183 = vmatprep.subr.bf16.mxu0 0
        %2184 = vmatpush1.bf16.msra.mxu0 0
        %2185 = vmatprep.subr.bf16.mxu0 0
        %2186 = vmatpush1.bf16.msra.mxu0 0
        %2187 = vmatprep.mubr.bf16.mxu0 %v2030
        %2188 = vmatmul.mubr.bf16.gmra.mrb[0].mxu0 %v1405
        %v2189 = vpop.f32.mrb[0].mxu0
        %v2190 = vadd.f32 %v2149, %v2189
        %v2191 = vpop.f32.mrb[0].mxu0
        %v2192 = vadd.f32 %v2151, %v2191
        %v2193 = vpop.f32.mrb[0].mxu0
        %v2194 = vpop.f32.mrb[0].mxu0
        %2195 = vdwg.mxu0
        %v2196 = vmax.f32 %v2108, 0.0
        %v2197 = vmax.f32 %v2110, 0.0
        %v2198 = vmax.f32 %v2190, 0.0
        %v2199 = vmax.f32 %v2192, 0.0
        %v2200 = vld [vmem:[%s7] sm:$0xf]
        %v2202 = vlaneseq
        %v2203 = vshrl.u32 %v2202, 7
        %v2204 = vsub.s32 0, %v2203
        %v2205 = vrot.slane %v2200, %v2204
        %v2206 = vlaneseq
        %v2207 = vshrl.u32 %v2206, 7
        %v2208 = vsub.s32 1, %v2207
        %v2209 = vrot.slane %v2200, %v2208
        %v2210 = vlaneseq
        %v2211 = vshrl.u32 %v2210, 7
        %v2212 = vsub.s32 2, %v2211
        %v2213 = vrot.slane %v2200, %v2212
        %v2214 = vlaneseq
        %v2215 = vshrl.u32 %v2214, 7
        %v2216 = vsub.s32 3, %v2215
        %v2217 = vrot.slane %v2200, %v2216
        %v2222 = vmul.f32 %v2196, %v2205
        %v2223 = vmul.f32 %v2197, %v2209
        %v2224 = vmul.f32 %v2198, %v2213
        %v2225 = vmul.f32 %v2199, %v2217
        %v2226 = vadd.f32 %v2222, %v2223
        %v2227 = vadd.f32 %v2226, %v2224
        %v2228 = vsel %vm1231, %v2225, 0.0
        %v2229 = vadd.f32 %v2227, %v2228
        %2230 = vadd.xlane.f32.xlu0 %v2229
        %v2231 = vpop.xlane.xlu0 %2230
        %v2232 = vld [vmem:[#allocation2] sm:$0x1]
        %v2234 = vlaneseq
        %v2235 = vshrl.u32 %v2234, 7
        %v2236 = vsub.s32 0, %v2235
        %v2237 = vrot.slane %v2232, %v2236
        %v2239 = vadd.f32 %v2231, %v2237
        %vm2240 = vcmask 7168
        %2241 = vst.msk [vmem:[%s393] sm:$0xff] %vm2240, %v2239
        %p2242 = scmp.lt.s32.totalorder %s27, 1
        %s2243 = scalar_select %p2242, %s27, 1
        %s2244 = smul.addr %s2243, 8
        %s2245 = scalar_lea.vmem %s9, %s2244
        // Predicated region
        $region73: #{tpu_custom_call.1} parent=55 // pred_check
          %p2246 = pneg %p239
        $region74: #{tpu_custom_call.1} parent=55 // pred_check_branch
          %2248 = sbr.rel (%p2246) target = $region76
        $region75: #{tpu_custom_call.1} parent=55 // pred_region
          _
        $region76: #{tpu_custom_call.1} parent=55 // pred_fallthru
          _
      $region56: #{tpu_custom_call.1} parent=5 // pred_fallthru
        _
      %p2249 = scmp.le.s32.totalorder 2, %s22
      // Predicated region
      $region77: #{tpu_custom_call.1} parent=5 // pred_check
        %p2250 = pneg %p2249
      $region78: #{tpu_custom_call.1} parent=5 // pred_check_branch
        %2252 = sbr.rel (%p2250) target = $region80
      $region79: #{tpu_custom_call.1} parent=5 // pred_region
        %s2253 = ssub.s32 %s22, 2
        // Predicated region
        $region81: #{tpu_custom_call.1} parent=79 // pred_check
          %p2254 = pneg %p245
        $region82: #{tpu_custom_call.1} parent=79 // pred_check_branch
          %2256 = sbr.rel (%p2254) target = $region84
        $region83: #{tpu_custom_call.1} parent=79 // pred_region
          %p2257 = scmp.lt.s32.totalorder %s28, 1
          %s2258 = scalar_select %p2257, %s28, 1
          %s2259 = smul.addr %s2258, 8
          %s2260 = scalar_lea.vmem %s9, %s2259
        $region84: #{tpu_custom_call.1} parent=79 // pred_fallthru
          _
      $region80: #{tpu_custom_call.1} parent=5 // pred_fallthru
        _
    $region6: #{tpu_custom_call.1} parent=1 // loop_footer
      %s26 = sadd.s32 1, %s22
    $region7: #{tpu_custom_call.1} parent=1 // loop_footer_branch
      %21 = sbr.rel target = $region3
    $region8: #{tpu_custom_call.1} parent=1 // loop_exit
      _
    %2261 = vsyncpa [#allocation4], 1
    %s2262 = scalar_lea.sflag [#allocation4], 1
    %2263 = vsyncpa %s2262, 1
    %2264 = vsyncpa [#allocation6], 1
    %2265 = vsyncpa [#allocation9], 1

</llo_original>
